<compile_context>
chip_gen: v5e
topology: v5e:2x2
jax: 0.10.0
libtpu: 0.0.40
codegen_flags: <defaults>
</compile_context>

<pallas_src>
import numpy as np
import jax
import jax.numpy as jnp
from jax.experimental import pallas as pl
from jax.experimental.pallas import tpu as pltpu


def _round_up(x, m):
    return ((x + m - 1) // m) * m


# ---------------------------------------------------------------------------
# Kernel
# ---------------------------------------------------------------------------
def sine_layer_kernel(x_ref, wt_ref, b_ref, o_ref):
    # x_ref  : VMEM (tm, in_f)     streamed dtype (bf16 by default)
    # wt_ref : VMEM (in_f, out_f)  omega-scaled W^T, streamed dtype (resident)
    # b_ref  : VMEM (1, out_f)     omega-scaled bias, f32
    # o_ref  : VMEM (tm, out_f)    output tile
    z = jnp.dot(x_ref[...], wt_ref[...], preferred_element_type=jnp.float32)
    z = z + b_ref[...]                       # broadcast f32 bias over rows
    o_ref[...] = jnp.sin(z).astype(o_ref.dtype)


# ---------------------------------------------------------------------------
# VMEM budget / tile-size selection
# ---------------------------------------------------------------------------
def _vmem_limit_bytes():
    """Generation-aware per-core VMEM limit for this pallas_call."""
    try:
        cap = int(pltpu.get_tpu_info().vmem_capacity_bytes)
    except Exception:
        cap = 64 << 20                        # conservative (v7x per-core)
    # Leave 16 MiB for Mosaic internal scratch / spill headroom:
    #   v7x (64 MiB)  -> 48 MiB ;  v5e/v6e (128 MiB) -> 96 MiB.
    return max(min(cap - (16 << 20), 96 << 20), 32 << 20)


_TM_CANDIDATES = (4096, 2048, 1024, 512, 256, 128)


def _choose_tm(n_rows, in_f, out_f, x_bytes, o_bytes, tile_budget_bytes):
    """Largest candidate row tile whose layout-padded, double-buffered tiles fit."""
    # Mosaic pads the minor dim of every VMEM tile to 128 lanes and the
    # second-minor dim to the native sublane tile (8 rows for 4-byte dtypes,
    # 16 rows for 2-byte dtypes).
    in_lanes = _round_up(in_f, 128)
    out_lanes = _round_up(out_f, 128)
    w_sub = (8 * 4) // x_bytes                           # 8 (f32) / 16 (bf16)
    # Resident W^T + bias; the BlockSpec pipeline still allocates 2 slots even
    # for constant index maps, so count both (conservative but honest).
    fixed = 2 * (_round_up(in_f, w_sub) * out_lanes * x_bytes
                 + 8 * out_lanes * 4)
    # x tile + out tile, double-buffered, per row of the tile.
    per_row = 2 * (in_lanes * x_bytes + out_lanes * o_bytes)
    avail = tile_budget_bytes - fixed
    if avail < 128 * per_row:
        # TODO(synk): fall back to a K/N-tiled variant for very large layers.
        raise ValueError(
            f"SineLayer weights too large for resident-W^T kernel: fixed={fixed}B, "
            f"min tiles={128 * per_row}B, budget={tile_budget_bytes}B.")
    vmem_tm = (avail // per_row // 128) * 128
    # Keep >= ~8 grid steps (>= 4 per v7x TensorCore) so the auto-pipeline has
    # work to overlap; >= 512-row tiles already hit ~85% of HBM roofline.
    step_cap = max(512, _round_up(pl.cdiv(n_rows, 8), 128))
    # Don't exceed the (128-floored) row count — keeps the last block a normal
    # partial block rather than a tile bigger than the whole array.
    rows_cap = max(128, (n_rows // 128) * 128)
    tm_max = min(vmem_tm, step_cap, rows_cap)
    for cand in _TM_CANDIDATES:        # fixed set -> stable compiles across N
        if cand <= tm_max:
            return cand
    return 128


# ---------------------------------------------------------------------------
# Wrappers
# ---------------------------------------------------------------------------
def prepare_sine_layer_params(weight, bias, omega_0, *, stream_dtype=jnp.bfloat16):
    """Fold omega into W^T / bias once per layer (hoist out of the forward call).

    sin(omega*(x @ W.T + b)) == sin(x @ (omega*W).T + omega*b)  — exact fold.
    """
    omega = jnp.asarray(omega_0, jnp.float32).reshape(())
    wt = (omega * weight.astype(jnp.float32)).T.astype(stream_dtype)   # (in_f, out_f)
    b2d = (omega * bias.astype(jnp.float32)).reshape(1, -1)            # (1, out_f) f32
    return wt, b2d


def sine_layer_forward_prepared(x, wt, b2d, *, out_dtype=None):
    """x: (N, in_f); wt: (in_f, out_f) omega-folded; b2d: (1, out_f) f32."""
    N, in_f = x.shape
    in_f_w, out_f = wt.shape
    assert in_f_w == in_f and b2d.shape == (1, out_f)

    stream_dtype = wt.dtype
    out_dtype = x.dtype if out_dtype is None else jnp.dtype(out_dtype)
    x_s = x.astype(stream_dtype)

    x_bytes = jnp.dtype(stream_dtype).itemsize
    o_bytes = jnp.dtype(out_dtype).itemsize

    vmem_limit = _vmem_limit_bytes()
    tm = _choose_tm(N, in_f, out_f, x_bytes, o_bytes, vmem_limit - (8 << 20))

    grid = (pl.cdiv(N, tm),)   # ragged final block: reads padded, writes masked
    return pl.pallas_call(
        sine_layer_kernel,
        out_shape=jax.ShapeDtypeStruct((N, out_f), out_dtype),
        grid_spec=pltpu.PrefetchScalarGridSpec(
            num_scalar_prefetch=0,
            grid=grid,
            in_specs=[
                pl.BlockSpec((tm, in_f), lambda i: (i, 0)),      # x row-tile
                pl.BlockSpec((in_f, out_f), lambda i: (0, 0)),   # omega*W^T (resident)
                pl.BlockSpec((1, out_f), lambda i: (0, 0)),      # omega*bias (f32)
            ],
            out_specs=pl.BlockSpec((tm, out_f), lambda i: (i, 0)),
        ),
        compiler_params=pltpu.CompilerParams(
            dimension_semantics=("parallel",),
            vmem_limit_bytes=int(vmem_limit),
        ),
    )(x_s, wt, b2d)


def sine_layer_forward(x, weight, bias, omega_0, *, stream_dtype=jnp.bfloat16,
                       out_dtype=None):
    """Convenience wrapper: folds params then runs the kernel.

    For repeated calls on the same layer, call prepare_sine_layer_params() once
    and reuse (wt, b2d) with sine_layer_forward_prepared().
    """
    wt, b2d = prepare_sine_layer_params(weight, bias, omega_0,
                                        stream_dtype=stream_dtype)
    return sine_layer_forward_prepared(x, wt, b2d, out_dtype=out_dtype)


# ---------------------------------------------------------------------------
# Parameter init (matches SineLayer.init_weights exactly)
# ---------------------------------------------------------------------------
def init_sine_layer_params(key, in_features, out_features, is_first=False, omega_0=30.0):
    dim = 1 if is_first else in_features
    w_std = (1.0 / dim) if is_first else (np.sqrt(6.0 / dim) / float(omega_0))
    kw, kb = jax.random.split(key)
    weight = jax.random.uniform(
        kw, (out_features, in_features), jnp.float32, minval=-w_std, maxval=w_std)
    bias = jax.random.uniform(
        kb, (out_features,), jnp.float32, minval=-w_std, maxval=w_std)
    omega = jnp.full((1,), omega_0, jnp.float32)     # trainable omega parameter
    return weight, bias, omega


if __name__ == "__main__":
    # Small shapes consistent with the module.  N is deliberately ragged (not a
    # multiple of the tile) to exercise the masked final block; out_features=64
    # exercises the sub-128 (masked-store) output path with no pad/slice passes.
    N, in_features, out_features = 200, 32, 64
    omega_0 = 30.0

    key = jax.random.PRNGKey(0)
    kx, kp = jax.random.split(key)

    x = jax.random.normal(kx, (N, in_features), jnp.float32)
    weight, bias, omega = init_sine_layer_params(
        kp, in_features, out_features, is_first=False, omega_0=omega_0)

    # Pure-JAX reference for correctness.
    ref = jnp.sin(omega[0] * (x @ weight.T + bias))

    # Exact f32 streaming path.
    out_f32 = sine_layer_forward(x, weight, bias, omega, stream_dtype=jnp.float32)
    out_f32 = jax.block_until_ready(out_f32)
    assert out_f32.shape == (N, out_features)
    np.testing.assert_allclose(np.asarray(out_f32), np.asarray(ref),
                               rtol=1e-5, atol=1e-5)

    # Default path: bf16 streaming of x / W^T, f32 MXU accumulation, f32 sine.
    out_def = sine_layer_forward(x, weight, bias, omega)
    out_def = jax.block_until_ready(out_def)
    assert out_def.shape == (N, out_features)
    assert out_def.dtype == x.dtype
    np.testing.assert_allclose(np.asarray(out_def), np.asarray(ref),
                               rtol=1e-1, atol=1e-1)

    print("KERNEL_OK")
</pallas_src>

<mosaic_0001>
module attributes {stable_mosaic.version = 11 : i64} {
  func.func @sine_layer_kernel(%arg0: i32, %arg1: memref<128x32xf32, #tpu.memory_space<vmem>>, %arg2: memref<32x64xf32, #tpu.memory_space<vmem>>, %arg3: memref<1x64xf32, #tpu.memory_space<vmem>>, %arg4: memref<128x64xf32, #tpu.memory_space<vmem>>) attributes {dimension_semantics = [#tpu.dimension_semantics<parallel>], iteration_bounds = array<i64: 2>, scalar_prefetch = 0 : i64, scratch_operands = 0 : i64, tpu.core_type = #tpu.core_type<tc>, window_params = [{transform_indices = @transform_0, window_bounds = array<i64: 128, 32>}, {pipeline_mode = #tpu.pipeline_mode<synchronous>, transform_indices = @transform_1, window_bounds = array<i64: 32, 64>}, {pipeline_mode = #tpu.pipeline_mode<synchronous>, transform_indices = @transform_2, window_bounds = array<i64: 1, 64>}, {transform_indices = @transform_3, window_bounds = array<i64: 128, 64>}]} {
    %c0 = arith.constant 0 : index
    %c0_0 = arith.constant 0 : index
    %0 = vector.load %arg1[%c0, %c0_0] : memref<128x32xf32, #tpu.memory_space<vmem>>, vector<128x32xf32>
    %c0_1 = arith.constant 0 : index
    %c0_2 = arith.constant 0 : index
    %1 = vector.load %arg2[%c0_1, %c0_2] : memref<32x64xf32, #tpu.memory_space<vmem>>, vector<32x64xf32>
    %cst = arith.constant dense<0.000000e+00> : vector<128x64xf32>
    %2 = tpu.matmul %0, %1, %cst {dimension_numbers = #tpu.dot_dimension_numbers<[1], [0], [0], [1], [0, 0, 1, 1], [], []>} : vector<128x32xf32>, vector<32x64xf32>, vector<128x64xf32> -> vector<128x64xf32>
    %c0_3 = arith.constant 0 : index
    %c0_4 = arith.constant 0 : index
    %3 = vector.load %arg3[%c0_3, %c0_4] : memref<1x64xf32, #tpu.memory_space<vmem>>, vector<1x64xf32>
    %4 = vector.broadcast %3 : vector<1x64xf32> to vector<128x64xf32>
    %5 = arith.addf %2, %4 : vector<128x64xf32>
    %6 = math.sin %5 : vector<128x64xf32>
    %c0_5 = arith.constant 0 : index
    %c0_6 = arith.constant 0 : index
    %7 = vector.load %arg4[%c0_5, %c0_6] : memref<128x64xf32, #tpu.memory_space<vmem>>, vector<128x64xf32>
    tpu.vector_store %arg4[%c0_5, %c0_6], %6 {strides = array<i32>} : memref<128x64xf32, #tpu.memory_space<vmem>>, vector<128x64xf32>,
    return
  }
  func.func @transform_0(%arg0: i32) -> (i32, i32) {
    %c0_i32 = arith.constant 0 : i32
    %c0_i32_0 = arith.constant 0 : i32
    return %arg0, %c0_i32 : i32, i32
  }
  func.func @transform_1(%arg0: i32) -> (i32, i32) {
    %c0_i32 = arith.constant 0 : i32
    %c0_i32_0 = arith.constant 0 : i32
    %c0_i32_1 = arith.constant 0 : i32
    return %c0_i32, %c0_i32_0 : i32, i32
  }
  func.func @transform_2(%arg0: i32) -> (i32, i32) {
    %c0_i32 = arith.constant 0 : i32
    %c0_i32_0 = arith.constant 0 : i32
    %c0_i32_1 = arith.constant 0 : i32
    return %c0_i32, %c0_i32_0 : i32, i32
  }
  func.func @transform_3(%arg0: i32) -> (i32, i32) {
    %c0_i32 = arith.constant 0 : i32
    %c0_i32_0 = arith.constant 0 : i32
    return %arg0, %c0_i32 : i32, i32
  }
}

</mosaic_0001>

<llo_original>
// kernel: tpu_custom_call.1
$region0: #{tpu_custom_call.1}
  #allocation0 [shape = 'u32[]', space=smem, size = 0x4, offset = 0x4, fixed_abs, tag = 'smem constant byte address 0x4 - core index']
  #allocation1 [shape = 'u32[72,128]{1,0:T(1,128)}', space=vmem, size = 0x9000, scoped, tag = 'internal scratch']
  %s0 = inlined_call_operand.vmem [shape: f32[200,32], index: 0, kind: input, shape index: {}]
  %s1 = inlined_call_operand.vmem [shape: f32[32,64], index: 1, kind: input, shape index: {}]
  %s2 = inlined_call_operand.vmem [shape: f32[1,64], index: 2, kind: input, shape index: {}]
  %s3 = inlined_call_operand.vmem [shape: f32[200,64], index: 3, kind: output, shape index: {}]
  %s4 = sld [smem:[#allocation0]]
  $region93: #{tpu_custom_call.1} parent=0
    _
  %s6 = ssub.s32 1, %s4
  %s7 = scalar_select 0, %s6, %s4
  $region1: #{tpu_custom_call.1} parent=0
    #allocation2 [shape = 'u8[131072]{0}', space=vmem, size = 0x20000, scoped, tag = 'output window, operand 0']
    loop: start=0, step=1, limit=4
    $region2: #{tpu_custom_call.1} parent=1 // loop_pre_header
      _
    $region3: #{tpu_custom_call.1} parent=1 // loop_header
      %s9 = sphi 0, %s13
      %p10 = scmp.ge.s32.totalorder %s9, 4
      %s19 = sphi 0, %s21
      %s22 = sphi 0, %s19
      %s23 = sphi 0, %s22
      %s39 = sphi 0, %s23
      %s43 = sphi 0, %s43
      %s45 = sphi 0, %s43
      %s46 = sphi 0, %s45
      %s60 = sphi 0, %s46
      %s64 = sphi 0, %s64
      %s66 = sphi 0, %s64
      %s67 = sphi 0, %s66
      %s81 = sphi 0, %s67
      %s87 = sphi 0, %s89
      %s90 = sphi 0, %s87
      %s91 = sphi 0, %s90
      %s107 = sphi 0, %s91
    $region4: #{tpu_custom_call.1} parent=1 // loop_header_branch
      %12 = sbr.rel (%p10) target = $region8
    $region5: #{tpu_custom_call.1} parent=1 // loop_body
      %s14 = ssub.s32 %s9, 1
      %s15 = ssub.s32 %s9, 2
      %s16 = sadd.s32 %s9, 1
      %s17 = ssub.s32 %s9, %s16
      %p18 = scmp.eq.s32.totalorder %s17, 0
      %s20 = sadd.s32 %s19, 1
      %s21 = scalar_select %p18, %s19, %s20
      %p24 = pneg %p18
      %p25 = scmp.eq.s32.totalorder %s9, 1
      %p26 = por %p24, %p25
      %p27 = scmp.ne.s32.totalorder %s19, %s22
      %p28 = scmp.eq.s32.totalorder %s9, 0
      %p29 = por %p27, %p28
      %p30 = scmp.ne.s32.totalorder %s19, %s22
      %p31 = scmp.eq.s32.totalorder %s14, 1
      %p32 = por %p30, %p31
      %p33 = scmp.ne.s32.totalorder %s22, %s23
      %p34 = scmp.eq.s32.totalorder %s14, 0
      %p35 = por %p33, %p34
      %p36 = scmp.ne.s32.totalorder %s22, %s23
      %p37 = scmp.eq.s32.totalorder %s15, 1
      %p38 = por %p36, %p37
      %p40 = scmp.ne.s32.totalorder %s23, %s39
      %p41 = scmp.eq.s32.totalorder %s15, 0
      %p42 = por %p40, %p41
      %s44 = sadd.s32 %s43, 1
      %p47 = scmp.eq.s32.totalorder %s9, 1
      %p48 = scmp.ne.s32.totalorder %s43, %s45
      %p49 = scmp.eq.s32.totalorder %s9, 0
      %p50 = por %p48, %p49
      %p51 = scmp.ne.s32.totalorder %s43, %s45
      %p52 = scmp.eq.s32.totalorder %s14, 1
      %p53 = por %p51, %p52
      %p54 = scmp.ne.s32.totalorder %s45, %s46
      %p55 = scmp.eq.s32.totalorder %s14, 0
      %p56 = por %p54, %p55
      %p57 = scmp.ne.s32.totalorder %s45, %s46
      %p58 = scmp.eq.s32.totalorder %s15, 1
      %p59 = por %p57, %p58
      %p61 = scmp.ne.s32.totalorder %s46, %s60
      %p62 = scmp.eq.s32.totalorder %s15, 0
      %p63 = por %p61, %p62
      %s65 = sadd.s32 %s64, 1
      %p68 = scmp.eq.s32.totalorder %s9, 1
      %p69 = scmp.ne.s32.totalorder %s64, %s66
      %p70 = scmp.eq.s32.totalorder %s9, 0
      %p71 = por %p69, %p70
      %p72 = scmp.ne.s32.totalorder %s64, %s66
      %p73 = scmp.eq.s32.totalorder %s14, 1
      %p74 = por %p72, %p73
      %p75 = scmp.ne.s32.totalorder %s66, %s67
      %p76 = scmp.eq.s32.totalorder %s14, 0
      %p77 = por %p75, %p76
      %p78 = scmp.ne.s32.totalorder %s66, %s67
      %p79 = scmp.eq.s32.totalorder %s15, 1
      %p80 = por %p78, %p79
      %p82 = scmp.ne.s32.totalorder %s67, %s81
      %p83 = scmp.eq.s32.totalorder %s15, 0
      %p84 = por %p82, %p83
      %s85 = ssub.s32 %s9, %s16
      %p86 = scmp.eq.s32.totalorder %s85, 0
      %s88 = sadd.s32 %s87, 1
      %s89 = scalar_select %p86, %s87, %s88
      %p92 = pneg %p86
      %p93 = scmp.eq.s32.totalorder %s9, 1
      %p94 = por %p92, %p93
      %p95 = scmp.ne.s32.totalorder %s87, %s90
      %p96 = scmp.eq.s32.totalorder %s9, 0
      %p97 = por %p95, %p96
      %p98 = scmp.ne.s32.totalorder %s87, %s90
      %p99 = scmp.eq.s32.totalorder %s14, 1
      %p100 = por %p98, %p99
      %p101 = scmp.ne.s32.totalorder %s90, %s91
      %p102 = scmp.eq.s32.totalorder %s14, 0
      %p103 = por %p101, %p102
      %p104 = scmp.ne.s32.totalorder %s90, %s91
      %p105 = scmp.eq.s32.totalorder %s15, 1
      %p106 = por %p104, %p105
      %p108 = scmp.ne.s32.totalorder %s91, %s107
      %p109 = scmp.eq.s32.totalorder %s15, 0
      %p110 = por %p108, %p109
      %p111 = scmp.le.s32.totalorder 1, %s9
      %p112 = scmp.lt.s32.totalorder %s9, 3
      %p113 = pnand %p111, %p112
      %p114 = pneg %p113
      // Predicated region
      $region9: #{tpu_custom_call.1} parent=5 // pred_check
        _
      $region10: #{tpu_custom_call.1} parent=5 // pred_check_branch
        %116 = sbr.rel (%p113) target = $region12
      $region11: #{tpu_custom_call.1} parent=5 // pred_region
        %s117 = ssub.s32 %s9, 1
        // Predicated region
        $region13: #{tpu_custom_call.1} parent=11 // pred_check
          %p118 = pneg %p56
        $region14: #{tpu_custom_call.1} parent=11 // pred_check_branch
          %120 = sbr.rel (%p118) target = $region16
        $region15: #{tpu_custom_call.1} parent=11 // pred_region
          _
        $region16: #{tpu_custom_call.1} parent=11 // pred_fallthru
          _
        // Predicated region
        $region17: #{tpu_custom_call.1} parent=11 // pred_check
          %p121 = pneg %p77
        $region18: #{tpu_custom_call.1} parent=11 // pred_check_branch
          %123 = sbr.rel (%p121) target = $region20
        $region19: #{tpu_custom_call.1} parent=11 // pred_region
          _
        $region20: #{tpu_custom_call.1} parent=11 // pred_fallthru
          _
      $region12: #{tpu_custom_call.1} parent=5 // pred_fallthru
        _
      %p124 = scmp.lt.s32.totalorder %s9, 2
      // Predicated region
      $region21: #{tpu_custom_call.1} parent=5 // pred_check
        %p125 = pneg %p124
      $region22: #{tpu_custom_call.1} parent=5 // pred_check_branch
        %127 = sbr.rel (%p125) target = $region24
      $region23: #{tpu_custom_call.1} parent=5 // pred_region
        // Predicated region
        $region25: #{tpu_custom_call.1} parent=23 // pred_check
          %p128 = pneg %p29
        $region26: #{tpu_custom_call.1} parent=23 // pred_check_branch
          %130 = sbr.rel (%p128) target = $region28
        $region27: #{tpu_custom_call.1} parent=23 // pred_region
          %s131 = smul.u32 16, %s9
          %s132 = ssub.s32 25, %s131
          %p133 = scmp.lt.s32.totalorder %s132, 16
          %s134 = scalar_select %p133, %s132, 16
          %s135 = smul.u32 8, %s134
          %p136 = scmp.lt.s32.totalorder %s131, 24
          %s137 = scalar_select %p136, %s131, 24
          %s138 = smul.addr %s137, 8
          %s139 = scalar_lea.vmem %s0, %s138
          %s140 = smul.u32 16, %s9
          %s141 = ssub.s32 25, %s140
          %p142 = scmp.lt.s32.totalorder %s141, 16
          %s143 = scalar_select %p142, %s141, 16
          %s144 = smul.u32 8, %s143
        $region28: #{tpu_custom_call.1} parent=23 // pred_fallthru
          _
      $region24: #{tpu_custom_call.1} parent=5 // pred_fallthru
        _
      %p145 = scmp.le.s32.totalorder 1, %s9
      %p146 = scmp.lt.s32.totalorder %s9, 3
      %p147 = pnand %p145, %p146
      %p148 = pneg %p147
      // Predicated region
      $region29: #{tpu_custom_call.1} parent=5 // pred_check
        _
      $region30: #{tpu_custom_call.1} parent=5 // pred_check_branch
        %150 = sbr.rel (%p147) target = $region32
      $region31: #{tpu_custom_call.1} parent=5 // pred_region
        %s151 = ssub.s32 %s9, 1
        %s152 = smul.u32 16, %s14
        %s153 = ssub.s32 25, %s152
        %p154 = scmp.lt.s32.totalorder %s153, 16
        %s155 = scalar_select %p154, %s153, 16
        %s156 = smul.u32 8, %s155
        %p157 = scmp.lt.s32.totalorder %s152, 24
        %s158 = scalar_select %p157, %s152, 24
        %s159 = smul.addr %s158, 8
        %s160 = scalar_lea.vmem %s0, %s159
        %p161 = pneg %p35
        %p162 = pneg %p32
        %p163 = pneg %p56
        %p164 = pneg %p53
        %p165 = pneg %p77
        %p166 = pneg %p74
        %p167 = pneg %p103
        %p168 = pneg %p100
        %s169 = sand.u32 %s90, 1
        %s170 = sand.u32 %s90, 1
        %s171 = smul.addr %s170, 128
        %s172 = scalar_lea.vmem [#allocation2], %s171
        %s173 = smul.u32 16, %s14
        %s174 = ssub.s32 25, %s173
        %p175 = scmp.lt.s32.totalorder %s174, 16
        %s176 = scalar_select %p175, %s174, 16
        %s177 = smul.u32 8, %s176
        %p178 = scmp.lt.s32.totalorder %s173, 24
        %s179 = scalar_select %p178, %s173, 24
        %s180 = smul.addr %s179, 8
        %s181 = scalar_lea.vmem %s0, %s180
        %s182 = smul.u32 16, %s14
        %s183 = ssub.s32 25, %s182
        %p184 = scmp.lt.s32.totalorder %s183, 16
        %s185 = scalar_select %p184, %s183, 16
        %s186 = smul.u32 8, %s185
        %s187 = smul.u32 16, %s14
        %s188 = ssub.s32 25, %s187
        %p189 = scmp.lt.s32.totalorder %s188, 16
        %s190 = scalar_select %p189, %s188, 16
        %s191 = smul.u32 8, %s190
        %v192 = vld [vmem:[%s181] sm:$0xff]
        %v193 = vld [vmem:[%s181 + $0x8] sm:$0xff]
        %v194 = vld [vmem:[%s181 + $0x10] sm:$0xff]
        %v195 = vld [vmem:[%s181 + $0x18] sm:$0xff]
        %v196 = vld [vmem:[%s181 + $0x20] sm:$0xff]
        %v197 = vld [vmem:[%s181 + $0x28] sm:$0xff]
        %v198 = vld [vmem:[%s181 + $0x30] sm:$0xff]
        %v199 = vld [vmem:[%s181 + $0x38] sm:$0xff]
        %v200 = vld [vmem:[%s181 + $0x40] sm:$0xff]
        %v201 = vld [vmem:[%s181 + $0x48] sm:$0xff]
        %v202 = vld [vmem:[%s181 + $0x50] sm:$0xff]
        %v203 = vld [vmem:[%s181 + $0x58] sm:$0xff]
        %v204 = vld [vmem:[%s181 + $0x60] sm:$0xff]
        %v205 = vld [vmem:[%s181 + $0x68] sm:$0xff]
        %v206 = vld [vmem:[%s181 + $0x70] sm:$0xff]
        %v207 = vld [vmem:[%s181 + $0x78] sm:$0xff]
        %v208 = vld [vmem:[%s1] sm:$0xff]
        %v209 = vld [vmem:[%s1 + $0x8] sm:$0xff]
        %v210 = vld [vmem:[%s1 + $0x10] sm:$0xff]
        %v211 = vld [vmem:[%s1 + $0x18] sm:$0xff]
        %v212 = vld [vmem:[%s2] sm:$0x1]
        %v214 = vperm.slane %v212, 0
        %vm216 = vcmask 261120
        %v218 = vsel %vm216, %v192, 0
        %v221 = vsel %vm216, %v193, 0
        %v224 = vsel %vm216, %v194, 0
        %v227 = vsel %vm216, %v195, 0
        %v230 = vsel %vm216, %v196, 0
        %v233 = vsel %vm216, %v197, 0
        %v236 = vsel %vm216, %v198, 0
        %v239 = vsel %vm216, %v199, 0
        %v242 = vsel %vm216, %v200, 0
        %v245 = vsel %vm216, %v201, 0
        %v248 = vsel %vm216, %v202, 0
        %v251 = vsel %vm216, %v203, 0
        %v254 = vsel %vm216, %v204, 0
        %v257 = vsel %vm216, %v205, 0
        %v260 = vsel %vm216, %v206, 0
        %v263 = vsel %vm216, %v207, 0
        %265 = vmatpush.msra.mxu0 0.0
        %266 = vmatpush.msra.mxu0 0.0
        %267 = vmatpush.msra.mxu0 0.0
        %268 = vmatpush.msra.mxu0 0.0
        %269 = vmatpush.msra.mxu0 0.0
        %270 = vmatpush.msra.mxu0 0.0
        %271 = vmatpush.msra.mxu0 0.0
        %272 = vmatpush.msra.mxu0 0.0
        %273 = vmatpush.msra.mxu0 0.0
        %274 = vmatpush.msra.mxu0 0.0
        %275 = vmatpush.msra.mxu0 0.0
        %276 = vmatpush.msra.mxu0 0.0
        %277 = vmatpush.msra.mxu0 %v211
        %278 = vmatpush.msra.mxu0 %v210
        %279 = vmatpush.msra.mxu0 %v209
        %280 = vmatpush.msra.mxu0 %v208
        %281 = vmatmul.f32.gmra.mxu0 %v218
        %v282 = vpop.f32.mrf.mxu0
        %v283 = vadd.f32 %v214, %v282
        %284 = vmatmul.f32.gmra.mxu0 %v221
        %v285 = vpop.f32.mrf.mxu0
        %v286 = vadd.f32 %v214, %v285
        %287 = vmatmul.f32.gmra.mxu0 %v224
        %v288 = vpop.f32.mrf.mxu0
        %v289 = vadd.f32 %v214, %v288
        %290 = vmatmul.f32.gmra.mxu0 %v227
        %v291 = vpop.f32.mrf.mxu0
        %v292 = vadd.f32 %v214, %v291
        %293 = vmatmul.f32.gmra.mxu0 %v230
        %v294 = vpop.f32.mrf.mxu0
        %v295 = vadd.f32 %v214, %v294
        %296 = vmatmul.f32.gmra.mxu0 %v233
        %v297 = vpop.f32.mrf.mxu0
        %v298 = vadd.f32 %v214, %v297
        %299 = vmatmul.f32.gmra.mxu0 %v236
        %v300 = vpop.f32.mrf.mxu0
        %v301 = vadd.f32 %v214, %v300
        %302 = vmatmul.f32.gmra.mxu0 %v239
        %v303 = vpop.f32.mrf.mxu0
        %v304 = vadd.f32 %v214, %v303
        %305 = vmatmul.f32.gmra.mxu0 %v242
        %v306 = vpop.f32.mrf.mxu0
        %v307 = vadd.f32 %v214, %v306
        %308 = vmatmul.f32.gmra.mxu0 %v245
        %v309 = vpop.f32.mrf.mxu0
        %v310 = vadd.f32 %v214, %v309
        %311 = vmatmul.f32.gmra.mxu0 %v248
        %v312 = vpop.f32.mrf.mxu0
        %v313 = vadd.f32 %v214, %v312
        %314 = vmatmul.f32.gmra.mxu0 %v251
        %v315 = vpop.f32.mrf.mxu0
        %v316 = vadd.f32 %v214, %v315
        %317 = vmatmul.f32.gmra.mxu0 %v254
        %v318 = vpop.f32.mrf.mxu0
        %v319 = vadd.f32 %v214, %v318
        %320 = vmatmul.f32.gmra.mxu0 %v257
        %v321 = vpop.f32.mrf.mxu0
        %v322 = vadd.f32 %v214, %v321
        %323 = vmatmul.f32.gmra.mxu0 %v260
        %v324 = vpop.f32.mrf.mxu0
        %v325 = vadd.f32 %v214, %v324
        %326 = vmatmul.f32.gmra.mxu0 %v263
        %v327 = vpop.f32.mrf.mxu0
        %v328 = vadd.f32 %v214, %v327
        %329 = vdwg.mxu0
        %v330 = vand.u32 2147483647, %v283
        %vm331 = vcmp.le.f32.partialorder %v330, 0.7853982
        %vm332 = vcmp.lt.s32.totalorder %v283, 0
        %v333 = vand.u32 %v283, 2139095040
        %v334 = vshrl.u32 %v333, 23
        %v335 = vsub.s32 %v334, 127
        %v336 = vand.u32 2147483647, %v283
        %v337 = vand.u32 %v336, 8388607
        %v338 = vor.u32 %v337, 8388608
        %v339 = vsub.s32 0, %v338
        %v340 = vadd.s32 %v335, 1
        %vm341 = vcmp.gt.s32.totalorder %v340, 0
        %v342 = vsel %vm341, %v340, 0
        %v343 = vshrl.u32 %v342, 5
        %v344 = vand.u32 %v342, 31
        %v345 = vsub.s32 32, %v344
        %v346 = vshrl.u32 683565275, %v345
        %v347 = vshll.u32 683565275, %v344
        %v348 = vshrl.u32 2475754826, %v345
        %v349 = vor.u32 %v347, %v348
        %v350 = vshll.u32 2475754826, %v344
        %v351 = vshrl.u32 2131351028, %v345
        %v352 = vor.u32 %v350, %v351
        %v353 = vshll.u32 2131351028, %v344
        %v354 = vshrl.u32 2102212464, %v345
        %v355 = vor.u32 %v353, %v354
        %v356 = vshll.u32 2102212464, %v344
        %v357 = vshrl.u32 920167782, %v345
        %v358 = vor.u32 %v356, %v357
        %v359 = vshll.u32 920167782, %v344
        %v360 = vshrl.u32 1326507024, %v345
        %v361 = vor.u32 %v359, %v360
        %vm362 = vcmp.lt.s32.totalorder %v343, 1
        %vm363 = vcmp.lt.s32.totalorder %v343, 2
        %vm364 = vcmp.lt.s32.totalorder %v343, 3
        %vm365 = vcmp.lt.s32.totalorder %v343, 4
        %v366 = vsel %vm362, %v346, %v349
        %v367 = vsel %vm365, %v355, 2102212464
        %v368 = vsel %vm364, %v352, %v367
        %v369 = vsel %vm363, %v366, %v368
        %v370 = vsel %vm362, %v349, %v352
        %v371 = vsel %vm365, %v358, 920167782
        %v372 = vsel %vm364, %v355, %v371
        %v373 = vsel %vm363, %v370, %v372
        %v374 = vsel %vm362, %v352, %v355
        %v375 = vsel %vm365, %v361, 1326507024
        %v376 = vsel %vm364, %v358, %v375
        %v377 = vsel %vm363, %v374, %v376
        %v378 = vshll.u32 %v338, 8
        %v379 = vand.u32 %v378, 65535
        %v380 = vshrl.u32 %v378, 16
        %v381 = vand.u32 %v377, 65535
        %v382 = vshrl.u32 %v377, 16
        %v383 = vmul.u32 %v379, %v381
        %v384 = vmul.u32 %v379, %v382
        %v385 = vmul.u32 %v380, %v381
        %v386 = vmul.u32 %v380, %v382
        %v387 = vshll.u32 %v384, 16
        %v388 = vshrl.u32 %v384, 16
        %v389 = vshll.u32 %v385, 16
        %v390 = vshrl.u32 %v385, 16
        %vm391 = vc.u32 %v383, %v387
        %v392 = vsel %vm391, 1, 0
        %v393 = vadd.s32 %v383, %v387
        %v394 = vadd.s32 %v386, %v392
        %vm395 = vc.u32 %v393, %v389
        %v396 = vsel %vm395, 1, 0
        %v397 = vadd.s32 %v393, %v389
        %v398 = vadd.s32 %v394, %v396
        %v399 = vadd.s32 %v398, %v388
        %v400 = vadd.s32 %v399, %v390
        %v401 = vand.u32 %v378, 65535
        %v402 = vshrl.u32 %v378, 16
        %v403 = vand.u32 %v373, 65535
        %v404 = vshrl.u32 %v373, 16
        %v405 = vmul.u32 %v401, %v403
        %v406 = vmul.u32 %v401, %v404
        %v407 = vmul.u32 %v402, %v403
        %v408 = vmul.u32 %v402, %v404
        %v409 = vshll.u32 %v406, 16
        %v410 = vshrl.u32 %v406, 16
        %v411 = vshll.u32 %v407, 16
        %v412 = vshrl.u32 %v407, 16
        %vm413 = vc.u32 %v405, %v409
        %v414 = vsel %vm413, 1, 0
        %v415 = vadd.s32 %v405, %v409
        %v416 = vadd.s32 %v408, %v414
        %vm417 = vc.u32 %v415, %v411
        %v418 = vsel %vm417, 1, 0
        %v419 = vadd.s32 %v415, %v411
        %v420 = vadd.s32 %v416, %v418
        %v421 = vadd.s32 %v420, %v410
        %v422 = vadd.s32 %v421, %v412
        %v423 = vmul.u32 %v378, %v369
        %v424 = vadd.s32 %v400, %v419
        %vm425 = vc.u32 %v400, %v419
        %v426 = vadd.s32 %v422, 1
        %v427 = vsel %vm425, %v426, %v422
        %v428 = vadd.s32 %v423, %v427
        %v429 = vadd.s32 %v428, 536870912
        %v430 = vshrl.u32 %v429, 30
        %v431 = vshll.u32 %v430, 30
        %v432 = vsub.s32 %v428, %v431
        %vm433 = vcmp.lt.s32.totalorder %v432, 0
        %v434 = vsub.s32 0, %v432
        %v435 = vsel %vm433, %v434, %v432
        %v436 = vclz %v435
        %v437 = vsub.s32 %v436, 2
        %vm438 = vcmp.gt.s32.totalorder 0, %v437
        %v439 = vsel %vm438, 0, %v437
        %v440 = vsub.s32 32, %v439
        %v441 = vshll.u32 %v432, %v439
        %v442 = vshrl.u32 %v424, %v440
        %v443 = vor.u32 %v441, %v442
        %v444 = vsub.s32 4294967266, %v439
        %v445 = vadd.s32 %v444, 127
        %v446 = vshll.u32 %v445, 23
        %v447 = vor.u32 4788187, %v446
        %v448 = vand.u32 2147483647, %v447
        %v450 = vcvt.s32.f32 %v443
        %v451 = vmul.f32 %v450, %v448
        %v452 = vxor.u32 %v451, 2147483648
        %v453 = vsel %vm332, %v452, %v451
        %v454 = vsub.s32 4, %v430
        %v455 = vsel %vm332, %v454, %v430
        %v456 = vsel %vm331, %v283, %v453
        %v457 = vsel %vm331, 0, %v455
        %v458 = vmul.f32 %v456, %v456
        %v459 = vmul.f32 %v458, -0.001358992
        %v460 = vadd.f32 %v459, 0.041655596
        %v461 = vmul.f32 %v458, %v460
        %v462 = vadd.f32 %v461, -0.4999988
        %v463 = vmul.f32 %v458, %v462
        %v464 = vadd.f32 1.0, %v463
        %v465 = vmul.f32 %v456, %v456
        %v466 = vmul.f32 %v465, -0.00019511016
        %v467 = vadd.f32 %v466, 0.008332121
        %v468 = vmul.f32 %v465, %v467
        %v469 = vadd.f32 %v468, -0.16666654
        %v470 = vmul.f32 %v465, %v469
        %v471 = vadd.f32 %v470, 1.0
        %v472 = vmul.f32 %v471, %v456
        %vm473 = vweird.f32 %v283
        %v474 = vadd.s32 %v457, 3
        %v475 = vand.u32 %v474, 3
        %vm476 = vcmp.lt.s32.totalorder %v475, 2
        %vm477 = vcmp.eq.s32.totalorder %v475, 0
        %v478 = vxor.u32 %v472, 2147483648
        %v479 = vsel %vm477, %v464, %v478
        %vm480 = vcmp.eq.s32.totalorder %v475, 2
        %v481 = vxor.u32 %v464, 2147483648
        %v482 = vsel %vm480, %v481, %v472
        %v483 = vsel %vm476, %v479, %v482
        %v484 = vsel %vm473, nan, %v483
        %v485 = vand.u32 2147483647, %v286
        %vm486 = vcmp.le.f32.partialorder %v485, 0.7853982
        %vm487 = vcmp.lt.s32.totalorder %v286, 0
        %v488 = vand.u32 %v286, 2139095040
        %v489 = vshrl.u32 %v488, 23
        %v490 = vsub.s32 %v489, 127
        %v491 = vand.u32 2147483647, %v286
        %v492 = vand.u32 %v491, 8388607
        %v493 = vor.u32 %v492, 8388608
        %v494 = vsub.s32 0, %v493
        %v495 = vadd.s32 %v490, 1
        %vm496 = vcmp.gt.s32.totalorder %v495, 0
        %v497 = vsel %vm496, %v495, 0
        %v498 = vshrl.u32 %v497, 5
        %v499 = vand.u32 %v497, 31
        %v500 = vsub.s32 32, %v499
        %v501 = vshrl.u32 683565275, %v500
        %v502 = vshll.u32 683565275, %v499
        %v503 = vshrl.u32 2475754826, %v500
        %v504 = vor.u32 %v502, %v503
        %v505 = vshll.u32 2475754826, %v499
        %v506 = vshrl.u32 2131351028, %v500
        %v507 = vor.u32 %v505, %v506
        %v508 = vshll.u32 2131351028, %v499
        %v509 = vshrl.u32 2102212464, %v500
        %v510 = vor.u32 %v508, %v509
        %v511 = vshll.u32 2102212464, %v499
        %v512 = vshrl.u32 920167782, %v500
        %v513 = vor.u32 %v511, %v512
        %v514 = vshll.u32 920167782, %v499
        %v515 = vshrl.u32 1326507024, %v500
        %v516 = vor.u32 %v514, %v515
        %vm517 = vcmp.lt.s32.totalorder %v498, 1
        %vm518 = vcmp.lt.s32.totalorder %v498, 2
        %vm519 = vcmp.lt.s32.totalorder %v498, 3
        %vm520 = vcmp.lt.s32.totalorder %v498, 4
        %v521 = vsel %vm517, %v501, %v504
        %v522 = vsel %vm520, %v510, 2102212464
        %v523 = vsel %vm519, %v507, %v522
        %v524 = vsel %vm518, %v521, %v523
        %v525 = vsel %vm517, %v504, %v507
        %v526 = vsel %vm520, %v513, 920167782
        %v527 = vsel %vm519, %v510, %v526
        %v528 = vsel %vm518, %v525, %v527
        %v529 = vsel %vm517, %v507, %v510
        %v530 = vsel %vm520, %v516, 1326507024
        %v531 = vsel %vm519, %v513, %v530
        %v532 = vsel %vm518, %v529, %v531
        %v533 = vshll.u32 %v493, 8
        %v534 = vand.u32 %v533, 65535
        %v535 = vshrl.u32 %v533, 16
        %v536 = vand.u32 %v532, 65535
        %v537 = vshrl.u32 %v532, 16
        %v538 = vmul.u32 %v534, %v536
        %v539 = vmul.u32 %v534, %v537
        %v540 = vmul.u32 %v535, %v536
        %v541 = vmul.u32 %v535, %v537
        %v542 = vshll.u32 %v539, 16
        %v543 = vshrl.u32 %v539, 16
        %v544 = vshll.u32 %v540, 16
        %v545 = vshrl.u32 %v540, 16
        %vm546 = vc.u32 %v538, %v542
        %v547 = vsel %vm546, 1, 0
        %v548 = vadd.s32 %v538, %v542
        %v549 = vadd.s32 %v541, %v547
        %vm550 = vc.u32 %v548, %v544
        %v551 = vsel %vm550, 1, 0
        %v552 = vadd.s32 %v548, %v544
        %v553 = vadd.s32 %v549, %v551
        %v554 = vadd.s32 %v553, %v543
        %v555 = vadd.s32 %v554, %v545
        %v556 = vand.u32 %v533, 65535
        %v557 = vshrl.u32 %v533, 16
        %v558 = vand.u32 %v528, 65535
        %v559 = vshrl.u32 %v528, 16
        %v560 = vmul.u32 %v556, %v558
        %v561 = vmul.u32 %v556, %v559
        %v562 = vmul.u32 %v557, %v558
        %v563 = vmul.u32 %v557, %v559
        %v564 = vshll.u32 %v561, 16
        %v565 = vshrl.u32 %v561, 16
        %v566 = vshll.u32 %v562, 16
        %v567 = vshrl.u32 %v562, 16
        %vm568 = vc.u32 %v560, %v564
        %v569 = vsel %vm568, 1, 0
        %v570 = vadd.s32 %v560, %v564
        %v571 = vadd.s32 %v563, %v569
        %vm572 = vc.u32 %v570, %v566
        %v573 = vsel %vm572, 1, 0
        %v574 = vadd.s32 %v570, %v566
        %v575 = vadd.s32 %v571, %v573
        %v576 = vadd.s32 %v575, %v565
        %v577 = vadd.s32 %v576, %v567
        %v578 = vmul.u32 %v533, %v524
        %v579 = vadd.s32 %v555, %v574
        %vm580 = vc.u32 %v555, %v574
        %v581 = vadd.s32 %v577, 1
        %v582 = vsel %vm580, %v581, %v577
        %v583 = vadd.s32 %v578, %v582
        %v584 = vadd.s32 %v583, 536870912
        %v585 = vshrl.u32 %v584, 30
        %v586 = vshll.u32 %v585, 30
        %v587 = vsub.s32 %v583, %v586
        %vm588 = vcmp.lt.s32.totalorder %v587, 0
        %v589 = vsub.s32 0, %v587
        %v590 = vsel %vm588, %v589, %v587
        %v591 = vclz %v590
        %v592 = vsub.s32 %v591, 2
        %vm593 = vcmp.gt.s32.totalorder 0, %v592
        %v594 = vsel %vm593, 0, %v592
        %v595 = vsub.s32 32, %v594
        %v596 = vshll.u32 %v587, %v594
        %v597 = vshrl.u32 %v579, %v595
        %v598 = vor.u32 %v596, %v597
        %v599 = vsub.s32 4294967266, %v594
        %v600 = vadd.s32 %v599, 127
        %v601 = vshll.u32 %v600, 23
        %v602 = vor.u32 4788187, %v601
        %v603 = vand.u32 2147483647, %v602
        %v605 = vcvt.s32.f32 %v598
        %v606 = vmul.f32 %v605, %v603
        %v607 = vxor.u32 %v606, 2147483648
        %v608 = vsel %vm487, %v607, %v606
        %v609 = vsub.s32 4, %v585
        %v610 = vsel %vm487, %v609, %v585
        %v611 = vsel %vm486, %v286, %v608
        %v612 = vsel %vm486, 0, %v610
        %v613 = vmul.f32 %v611, %v611
        %v614 = vmul.f32 %v613, -0.001358992
        %v615 = vadd.f32 %v614, 0.041655596
        %v616 = vmul.f32 %v613, %v615
        %v617 = vadd.f32 %v616, -0.4999988
        %v618 = vmul.f32 %v613, %v617
        %v619 = vadd.f32 1.0, %v618
        %v620 = vmul.f32 %v611, %v611
        %v621 = vmul.f32 %v620, -0.00019511016
        %v622 = vadd.f32 %v621, 0.008332121
        %v623 = vmul.f32 %v620, %v622
        %v624 = vadd.f32 %v623, -0.16666654
        %v625 = vmul.f32 %v620, %v624
        %v626 = vadd.f32 %v625, 1.0
        %v627 = vmul.f32 %v626, %v611
        %vm628 = vweird.f32 %v286
        %v629 = vadd.s32 %v612, 3
        %v630 = vand.u32 %v629, 3
        %vm631 = vcmp.lt.s32.totalorder %v630, 2
        %vm632 = vcmp.eq.s32.totalorder %v630, 0
        %v633 = vxor.u32 %v627, 2147483648
        %v634 = vsel %vm632, %v619, %v633
        %vm635 = vcmp.eq.s32.totalorder %v630, 2
        %v636 = vxor.u32 %v619, 2147483648
        %v637 = vsel %vm635, %v636, %v627
        %v638 = vsel %vm631, %v634, %v637
        %v639 = vsel %vm628, nan, %v638
        %v640 = vand.u32 2147483647, %v289
        %vm641 = vcmp.le.f32.partialorder %v640, 0.7853982
        %vm642 = vcmp.lt.s32.totalorder %v289, 0
        %v643 = vand.u32 %v289, 2139095040
        %v644 = vshrl.u32 %v643, 23
        %v645 = vsub.s32 %v644, 127
        %v646 = vand.u32 2147483647, %v289
        %v647 = vand.u32 %v646, 8388607
        %v648 = vor.u32 %v647, 8388608
        %v649 = vsub.s32 0, %v648
        %v650 = vadd.s32 %v645, 1
        %vm651 = vcmp.gt.s32.totalorder %v650, 0
        %v652 = vsel %vm651, %v650, 0
        %v653 = vshrl.u32 %v652, 5
        %v654 = vand.u32 %v652, 31
        %v655 = vsub.s32 32, %v654
        %v656 = vshrl.u32 683565275, %v655
        %v657 = vshll.u32 683565275, %v654
        %v658 = vshrl.u32 2475754826, %v655
        %v659 = vor.u32 %v657, %v658
        %v660 = vshll.u32 2475754826, %v654
        %v661 = vshrl.u32 2131351028, %v655
        %v662 = vor.u32 %v660, %v661
        %v663 = vshll.u32 2131351028, %v654
        %v664 = vshrl.u32 2102212464, %v655
        %v665 = vor.u32 %v663, %v664
        %v666 = vshll.u32 2102212464, %v654
        %v667 = vshrl.u32 920167782, %v655
        %v668 = vor.u32 %v666, %v667
        %v669 = vshll.u32 920167782, %v654
        %v670 = vshrl.u32 1326507024, %v655
        %v671 = vor.u32 %v669, %v670
        %vm672 = vcmp.lt.s32.totalorder %v653, 1
        %vm673 = vcmp.lt.s32.totalorder %v653, 2
        %vm674 = vcmp.lt.s32.totalorder %v653, 3
        %vm675 = vcmp.lt.s32.totalorder %v653, 4
        %v676 = vsel %vm672, %v656, %v659
        %v677 = vsel %vm675, %v665, 2102212464
        %v678 = vsel %vm674, %v662, %v677
        %v679 = vsel %vm673, %v676, %v678
        %v680 = vsel %vm672, %v659, %v662
        %v681 = vsel %vm675, %v668, 920167782
        %v682 = vsel %vm674, %v665, %v681
        %v683 = vsel %vm673, %v680, %v682
        %v684 = vsel %vm672, %v662, %v665
        %v685 = vsel %vm675, %v671, 1326507024
        %v686 = vsel %vm674, %v668, %v685
        %v687 = vsel %vm673, %v684, %v686
        %v688 = vshll.u32 %v648, 8
        %v689 = vand.u32 %v688, 65535
        %v690 = vshrl.u32 %v688, 16
        %v691 = vand.u32 %v687, 65535
        %v692 = vshrl.u32 %v687, 16
        %v693 = vmul.u32 %v689, %v691
        %v694 = vmul.u32 %v689, %v692
        %v695 = vmul.u32 %v690, %v691
        %v696 = vmul.u32 %v690, %v692
        %v697 = vshll.u32 %v694, 16
        %v698 = vshrl.u32 %v694, 16
        %v699 = vshll.u32 %v695, 16
        %v700 = vshrl.u32 %v695, 16
        %vm701 = vc.u32 %v693, %v697
        %v702 = vsel %vm701, 1, 0
        %v703 = vadd.s32 %v693, %v697
        %v704 = vadd.s32 %v696, %v702
        %vm705 = vc.u32 %v703, %v699
        %v706 = vsel %vm705, 1, 0
        %v707 = vadd.s32 %v703, %v699
        %v708 = vadd.s32 %v704, %v706
        %v709 = vadd.s32 %v708, %v698
        %v710 = vadd.s32 %v709, %v700
        %v711 = vand.u32 %v688, 65535
        %v712 = vshrl.u32 %v688, 16
        %v713 = vand.u32 %v683, 65535
        %v714 = vshrl.u32 %v683, 16
        %v715 = vmul.u32 %v711, %v713
        %v716 = vmul.u32 %v711, %v714
        %v717 = vmul.u32 %v712, %v713
        %v718 = vmul.u32 %v712, %v714
        %v719 = vshll.u32 %v716, 16
        %v720 = vshrl.u32 %v716, 16
        %v721 = vshll.u32 %v717, 16
        %v722 = vshrl.u32 %v717, 16
        %vm723 = vc.u32 %v715, %v719
        %v724 = vsel %vm723, 1, 0
        %v725 = vadd.s32 %v715, %v719
        %v726 = vadd.s32 %v718, %v724
        %vm727 = vc.u32 %v725, %v721
        %v728 = vsel %vm727, 1, 0
        %v729 = vadd.s32 %v725, %v721
        %v730 = vadd.s32 %v726, %v728
        %v731 = vadd.s32 %v730, %v720
        %v732 = vadd.s32 %v731, %v722
        %v733 = vmul.u32 %v688, %v679
        %v734 = vadd.s32 %v710, %v729
        %vm735 = vc.u32 %v710, %v729
        %v736 = vadd.s32 %v732, 1
        %v737 = vsel %vm735, %v736, %v732
        %v738 = vadd.s32 %v733, %v737
        %v739 = vadd.s32 %v738, 536870912
        %v740 = vshrl.u32 %v739, 30
        %v741 = vshll.u32 %v740, 30
        %v742 = vsub.s32 %v738, %v741
        %vm743 = vcmp.lt.s32.totalorder %v742, 0
        %v744 = vsub.s32 0, %v742
        %v745 = vsel %vm743, %v744, %v742
        %v746 = vclz %v745
        %v747 = vsub.s32 %v746, 2
        %vm748 = vcmp.gt.s32.totalorder 0, %v747
        %v749 = vsel %vm748, 0, %v747
        %v750 = vsub.s32 32, %v749
        %v751 = vshll.u32 %v742, %v749
        %v752 = vshrl.u32 %v734, %v750
        %v753 = vor.u32 %v751, %v752
        %v754 = vsub.s32 4294967266, %v749
        %v755 = vadd.s32 %v754, 127
        %v756 = vshll.u32 %v755, 23
        %v757 = vor.u32 4788187, %v756
        %v758 = vand.u32 2147483647, %v757
        %v760 = vcvt.s32.f32 %v753
        %v761 = vmul.f32 %v760, %v758
        %v762 = vxor.u32 %v761, 2147483648
        %v763 = vsel %vm642, %v762, %v761
        %v764 = vsub.s32 4, %v740
        %v765 = vsel %vm642, %v764, %v740
        %v766 = vsel %vm641, %v289, %v763
        %v767 = vsel %vm641, 0, %v765
        %v768 = vmul.f32 %v766, %v766
        %v769 = vmul.f32 %v768, -0.001358992
        %v770 = vadd.f32 %v769, 0.041655596
        %v771 = vmul.f32 %v768, %v770
        %v772 = vadd.f32 %v771, -0.4999988
        %v773 = vmul.f32 %v768, %v772
        %v774 = vadd.f32 1.0, %v773
        %v775 = vmul.f32 %v766, %v766
        %v776 = vmul.f32 %v775, -0.00019511016
        %v777 = vadd.f32 %v776, 0.008332121
        %v778 = vmul.f32 %v775, %v777
        %v779 = vadd.f32 %v778, -0.16666654
        %v780 = vmul.f32 %v775, %v779
        %v781 = vadd.f32 %v780, 1.0
        %v782 = vmul.f32 %v781, %v766
        %vm783 = vweird.f32 %v289
        %v784 = vadd.s32 %v767, 3
        %v785 = vand.u32 %v784, 3
        %vm786 = vcmp.lt.s32.totalorder %v785, 2
        %vm787 = vcmp.eq.s32.totalorder %v785, 0
        %v788 = vxor.u32 %v782, 2147483648
        %v789 = vsel %vm787, %v774, %v788
        %vm790 = vcmp.eq.s32.totalorder %v785, 2
        %v791 = vxor.u32 %v774, 2147483648
        %v792 = vsel %vm790, %v791, %v782
        %v793 = vsel %vm786, %v789, %v792
        %v794 = vsel %vm783, nan, %v793
        %v795 = vand.u32 2147483647, %v292
        %vm796 = vcmp.le.f32.partialorder %v795, 0.7853982
        %vm797 = vcmp.lt.s32.totalorder %v292, 0
        %v798 = vand.u32 %v292, 2139095040
        %v799 = vshrl.u32 %v798, 23
        %v800 = vsub.s32 %v799, 127
        %v801 = vand.u32 2147483647, %v292
        %v802 = vand.u32 %v801, 8388607
        %v803 = vor.u32 %v802, 8388608
        %v804 = vsub.s32 0, %v803
        %v805 = vadd.s32 %v800, 1
        %vm806 = vcmp.gt.s32.totalorder %v805, 0
        %v807 = vsel %vm806, %v805, 0
        %v808 = vshrl.u32 %v807, 5
        %v809 = vand.u32 %v807, 31
        %v810 = vsub.s32 32, %v809
        %v811 = vshrl.u32 683565275, %v810
        %v812 = vshll.u32 683565275, %v809
        %v813 = vshrl.u32 2475754826, %v810
        %v814 = vor.u32 %v812, %v813
        %v815 = vshll.u32 2475754826, %v809
        %v816 = vshrl.u32 2131351028, %v810
        %v817 = vor.u32 %v815, %v816
        %v818 = vshll.u32 2131351028, %v809
        %v819 = vshrl.u32 2102212464, %v810
        %v820 = vor.u32 %v818, %v819
        %v821 = vshll.u32 2102212464, %v809
        %v822 = vshrl.u32 920167782, %v810
        %v823 = vor.u32 %v821, %v822
        %v824 = vshll.u32 920167782, %v809
        %v825 = vshrl.u32 1326507024, %v810
        %v826 = vor.u32 %v824, %v825
        %vm827 = vcmp.lt.s32.totalorder %v808, 1
        %vm828 = vcmp.lt.s32.totalorder %v808, 2
        %vm829 = vcmp.lt.s32.totalorder %v808, 3
        %vm830 = vcmp.lt.s32.totalorder %v808, 4
        %v831 = vsel %vm827, %v811, %v814
        %v832 = vsel %vm830, %v820, 2102212464
        %v833 = vsel %vm829, %v817, %v832
        %v834 = vsel %vm828, %v831, %v833
        %v835 = vsel %vm827, %v814, %v817
        %v836 = vsel %vm830, %v823, 920167782
        %v837 = vsel %vm829, %v820, %v836
        %v838 = vsel %vm828, %v835, %v837
        %v839 = vsel %vm827, %v817, %v820
        %v840 = vsel %vm830, %v826, 1326507024
        %v841 = vsel %vm829, %v823, %v840
        %v842 = vsel %vm828, %v839, %v841
        %v843 = vshll.u32 %v803, 8
        %v844 = vand.u32 %v843, 65535
        %v845 = vshrl.u32 %v843, 16
        %v846 = vand.u32 %v842, 65535
        %v847 = vshrl.u32 %v842, 16
        %v848 = vmul.u32 %v844, %v846
        %v849 = vmul.u32 %v844, %v847
        %v850 = vmul.u32 %v845, %v846
        %v851 = vmul.u32 %v845, %v847
        %v852 = vshll.u32 %v849, 16
        %v853 = vshrl.u32 %v849, 16
        %v854 = vshll.u32 %v850, 16
        %v855 = vshrl.u32 %v850, 16
        %vm856 = vc.u32 %v848, %v852
        %v857 = vsel %vm856, 1, 0
        %v858 = vadd.s32 %v848, %v852
        %v859 = vadd.s32 %v851, %v857
        %vm860 = vc.u32 %v858, %v854
        %v861 = vsel %vm860, 1, 0
        %v862 = vadd.s32 %v858, %v854
        %v863 = vadd.s32 %v859, %v861
        %v864 = vadd.s32 %v863, %v853
        %v865 = vadd.s32 %v864, %v855
        %v866 = vand.u32 %v843, 65535
        %v867 = vshrl.u32 %v843, 16
        %v868 = vand.u32 %v838, 65535
        %v869 = vshrl.u32 %v838, 16
        %v870 = vmul.u32 %v866, %v868
        %v871 = vmul.u32 %v866, %v869
        %v872 = vmul.u32 %v867, %v868
        %v873 = vmul.u32 %v867, %v869
        %v874 = vshll.u32 %v871, 16
        %v875 = vshrl.u32 %v871, 16
        %v876 = vshll.u32 %v872, 16
        %v877 = vshrl.u32 %v872, 16
        %vm878 = vc.u32 %v870, %v874
        %v879 = vsel %vm878, 1, 0
        %v880 = vadd.s32 %v870, %v874
        %v881 = vadd.s32 %v873, %v879
        %vm882 = vc.u32 %v880, %v876
        %v883 = vsel %vm882, 1, 0
        %v884 = vadd.s32 %v880, %v876
        %v885 = vadd.s32 %v881, %v883
        %v886 = vadd.s32 %v885, %v875
        %v887 = vadd.s32 %v886, %v877
        %v888 = vmul.u32 %v843, %v834
        %v889 = vadd.s32 %v865, %v884
        %vm890 = vc.u32 %v865, %v884
        %v891 = vadd.s32 %v887, 1
        %v892 = vsel %vm890, %v891, %v887
        %v893 = vadd.s32 %v888, %v892
        %v894 = vadd.s32 %v893, 536870912
        %v895 = vshrl.u32 %v894, 30
        %v896 = vshll.u32 %v895, 30
        %v897 = vsub.s32 %v893, %v896
        %vm898 = vcmp.lt.s32.totalorder %v897, 0
        %v899 = vsub.s32 0, %v897
        %v900 = vsel %vm898, %v899, %v897
        %v901 = vclz %v900
        %v902 = vsub.s32 %v901, 2
        %vm903 = vcmp.gt.s32.totalorder 0, %v902
        %v904 = vsel %vm903, 0, %v902
        %v905 = vsub.s32 32, %v904
        %v906 = vshll.u32 %v897, %v904
        %v907 = vshrl.u32 %v889, %v905
        %v908 = vor.u32 %v906, %v907
        %v909 = vsub.s32 4294967266, %v904
        %v910 = vadd.s32 %v909, 127
        %v911 = vshll.u32 %v910, 23
        %v912 = vor.u32 4788187, %v911
        %v913 = vand.u32 2147483647, %v912
        %v915 = vcvt.s32.f32 %v908
        %v916 = vmul.f32 %v915, %v913
        %v917 = vxor.u32 %v916, 2147483648
        %v918 = vsel %vm797, %v917, %v916
        %v919 = vsub.s32 4, %v895
        %v920 = vsel %vm797, %v919, %v895
        %v921 = vsel %vm796, %v292, %v918
        %v922 = vsel %vm796, 0, %v920
        %v923 = vmul.f32 %v921, %v921
        %v924 = vmul.f32 %v923, -0.001358992
        %v925 = vadd.f32 %v924, 0.041655596
        %v926 = vmul.f32 %v923, %v925
        %v927 = vadd.f32 %v926, -0.4999988
        %v928 = vmul.f32 %v923, %v927
        %v929 = vadd.f32 1.0, %v928
        %v930 = vmul.f32 %v921, %v921
        %v931 = vmul.f32 %v930, -0.00019511016
        %v932 = vadd.f32 %v931, 0.008332121
        %v933 = vmul.f32 %v930, %v932
        %v934 = vadd.f32 %v933, -0.16666654
        %v935 = vmul.f32 %v930, %v934
        %v936 = vadd.f32 %v935, 1.0
        %v937 = vmul.f32 %v936, %v921
        %vm938 = vweird.f32 %v292
        %v939 = vadd.s32 %v922, 3
        %v940 = vand.u32 %v939, 3
        %vm941 = vcmp.lt.s32.totalorder %v940, 2
        %vm942 = vcmp.eq.s32.totalorder %v940, 0
        %v943 = vxor.u32 %v937, 2147483648
        %v944 = vsel %vm942, %v929, %v943
        %vm945 = vcmp.eq.s32.totalorder %v940, 2
        %v946 = vxor.u32 %v929, 2147483648
        %v947 = vsel %vm945, %v946, %v937
        %v948 = vsel %vm941, %v944, %v947
        %v949 = vsel %vm938, nan, %v948
        %v950 = vand.u32 2147483647, %v295
        %vm951 = vcmp.le.f32.partialorder %v950, 0.7853982
        %vm952 = vcmp.lt.s32.totalorder %v295, 0
        %v953 = vand.u32 %v295, 2139095040
        %v954 = vshrl.u32 %v953, 23
        %v955 = vsub.s32 %v954, 127
        %v956 = vand.u32 2147483647, %v295
        %v957 = vand.u32 %v956, 8388607
        %v958 = vor.u32 %v957, 8388608
        %v959 = vsub.s32 0, %v958
        %v960 = vadd.s32 %v955, 1
        %vm961 = vcmp.gt.s32.totalorder %v960, 0
        %v962 = vsel %vm961, %v960, 0
        %v963 = vshrl.u32 %v962, 5
        %v964 = vand.u32 %v962, 31
        %v965 = vsub.s32 32, %v964
        %v966 = vshrl.u32 683565275, %v965
        %v967 = vshll.u32 683565275, %v964
        %v968 = vshrl.u32 2475754826, %v965
        %v969 = vor.u32 %v967, %v968
        %v970 = vshll.u32 2475754826, %v964
        %v971 = vshrl.u32 2131351028, %v965
        %v972 = vor.u32 %v970, %v971
        %v973 = vshll.u32 2131351028, %v964
        %v974 = vshrl.u32 2102212464, %v965
        %v975 = vor.u32 %v973, %v974
        %v976 = vshll.u32 2102212464, %v964
        %v977 = vshrl.u32 920167782, %v965
        %v978 = vor.u32 %v976, %v977
        %v979 = vshll.u32 920167782, %v964
        %v980 = vshrl.u32 1326507024, %v965
        %v981 = vor.u32 %v979, %v980
        %vm982 = vcmp.lt.s32.totalorder %v963, 1
        %vm983 = vcmp.lt.s32.totalorder %v963, 2
        %vm984 = vcmp.lt.s32.totalorder %v963, 3
        %vm985 = vcmp.lt.s32.totalorder %v963, 4
        %v986 = vsel %vm982, %v966, %v969
        %v987 = vsel %vm985, %v975, 2102212464
        %v988 = vsel %vm984, %v972, %v987
        %v989 = vsel %vm983, %v986, %v988
        %v990 = vsel %vm982, %v969, %v972
        %v991 = vsel %vm985, %v978, 920167782
        %v992 = vsel %vm984, %v975, %v991
        %v993 = vsel %vm983, %v990, %v992
        %v994 = vsel %vm982, %v972, %v975
        %v995 = vsel %vm985, %v981, 1326507024
        %v996 = vsel %vm984, %v978, %v995
        %v997 = vsel %vm983, %v994, %v996
        %v998 = vshll.u32 %v958, 8
        %v999 = vand.u32 %v998, 65535
        %v1000 = vshrl.u32 %v998, 16
        %v1001 = vand.u32 %v997, 65535
        %v1002 = vshrl.u32 %v997, 16
        %v1003 = vmul.u32 %v999, %v1001
        %v1004 = vmul.u32 %v999, %v1002
        %v1005 = vmul.u32 %v1000, %v1001
        %v1006 = vmul.u32 %v1000, %v1002
        %v1007 = vshll.u32 %v1004, 16
        %v1008 = vshrl.u32 %v1004, 16
        %v1009 = vshll.u32 %v1005, 16
        %v1010 = vshrl.u32 %v1005, 16
        %vm1011 = vc.u32 %v1003, %v1007
        %v1012 = vsel %vm1011, 1, 0
        %v1013 = vadd.s32 %v1003, %v1007
        %v1014 = vadd.s32 %v1006, %v1012
        %vm1015 = vc.u32 %v1013, %v1009
        %v1016 = vsel %vm1015, 1, 0
        %v1017 = vadd.s32 %v1013, %v1009
        %v1018 = vadd.s32 %v1014, %v1016
        %v1019 = vadd.s32 %v1018, %v1008
        %v1020 = vadd.s32 %v1019, %v1010
        %v1021 = vand.u32 %v998, 65535
        %v1022 = vshrl.u32 %v998, 16
        %v1023 = vand.u32 %v993, 65535
        %v1024 = vshrl.u32 %v993, 16
        %v1025 = vmul.u32 %v1021, %v1023
        %v1026 = vmul.u32 %v1021, %v1024
        %v1027 = vmul.u32 %v1022, %v1023
        %v1028 = vmul.u32 %v1022, %v1024
        %v1029 = vshll.u32 %v1026, 16
        %v1030 = vshrl.u32 %v1026, 16
        %v1031 = vshll.u32 %v1027, 16
        %v1032 = vshrl.u32 %v1027, 16
        %vm1033 = vc.u32 %v1025, %v1029
        %v1034 = vsel %vm1033, 1, 0
        %v1035 = vadd.s32 %v1025, %v1029
        %v1036 = vadd.s32 %v1028, %v1034
        %vm1037 = vc.u32 %v1035, %v1031
        %v1038 = vsel %vm1037, 1, 0
        %v1039 = vadd.s32 %v1035, %v1031
        %v1040 = vadd.s32 %v1036, %v1038
        %v1041 = vadd.s32 %v1040, %v1030
        %v1042 = vadd.s32 %v1041, %v1032
        %v1043 = vmul.u32 %v998, %v989
        %v1044 = vadd.s32 %v1020, %v1039
        %vm1045 = vc.u32 %v1020, %v1039
        %v1046 = vadd.s32 %v1042, 1
        %v1047 = vsel %vm1045, %v1046, %v1042
        %v1048 = vadd.s32 %v1043, %v1047
        %v1049 = vadd.s32 %v1048, 536870912
        %v1050 = vshrl.u32 %v1049, 30
        %v1051 = vshll.u32 %v1050, 30
        %v1052 = vsub.s32 %v1048, %v1051
        %vm1053 = vcmp.lt.s32.totalorder %v1052, 0
        %v1054 = vsub.s32 0, %v1052
        %v1055 = vsel %vm1053, %v1054, %v1052
        %v1056 = vclz %v1055
        %v1057 = vsub.s32 %v1056, 2
        %vm1058 = vcmp.gt.s32.totalorder 0, %v1057
        %v1059 = vsel %vm1058, 0, %v1057
        %v1060 = vsub.s32 32, %v1059
        %v1061 = vshll.u32 %v1052, %v1059
        %v1062 = vshrl.u32 %v1044, %v1060
        %v1063 = vor.u32 %v1061, %v1062
        %v1064 = vsub.s32 4294967266, %v1059
        %v1065 = vadd.s32 %v1064, 127
        %v1066 = vshll.u32 %v1065, 23
        %v1067 = vor.u32 4788187, %v1066
        %v1068 = vand.u32 2147483647, %v1067
        %v1070 = vcvt.s32.f32 %v1063
        %v1071 = vmul.f32 %v1070, %v1068
        %v1072 = vxor.u32 %v1071, 2147483648
        %v1073 = vsel %vm952, %v1072, %v1071
        %v1074 = vsub.s32 4, %v1050
        %v1075 = vsel %vm952, %v1074, %v1050
        %v1076 = vsel %vm951, %v295, %v1073
        %v1077 = vsel %vm951, 0, %v1075
        %v1078 = vmul.f32 %v1076, %v1076
        %v1079 = vmul.f32 %v1078, -0.001358992
        %v1080 = vadd.f32 %v1079, 0.041655596
        %v1081 = vmul.f32 %v1078, %v1080
        %v1082 = vadd.f32 %v1081, -0.4999988
        %v1083 = vmul.f32 %v1078, %v1082
        %v1084 = vadd.f32 1.0, %v1083
        %v1085 = vmul.f32 %v1076, %v1076
        %v1086 = vmul.f32 %v1085, -0.00019511016
        %v1087 = vadd.f32 %v1086, 0.008332121
        %v1088 = vmul.f32 %v1085, %v1087
        %v1089 = vadd.f32 %v1088, -0.16666654
        %v1090 = vmul.f32 %v1085, %v1089
        %v1091 = vadd.f32 %v1090, 1.0
        %v1092 = vmul.f32 %v1091, %v1076
        %vm1093 = vweird.f32 %v295
        %v1094 = vadd.s32 %v1077, 3
        %v1095 = vand.u32 %v1094, 3
        %vm1096 = vcmp.lt.s32.totalorder %v1095, 2
        %vm1097 = vcmp.eq.s32.totalorder %v1095, 0
        %v1098 = vxor.u32 %v1092, 2147483648
        %v1099 = vsel %vm1097, %v1084, %v1098
        %vm1100 = vcmp.eq.s32.totalorder %v1095, 2
        %v1101 = vxor.u32 %v1084, 2147483648
        %v1102 = vsel %vm1100, %v1101, %v1092
        %v1103 = vsel %vm1096, %v1099, %v1102
        %v1104 = vsel %vm1093, nan, %v1103
        %v1105 = vand.u32 2147483647, %v298
        %vm1106 = vcmp.le.f32.partialorder %v1105, 0.7853982
        %vm1107 = vcmp.lt.s32.totalorder %v298, 0
        %v1108 = vand.u32 %v298, 2139095040
        %v1109 = vshrl.u32 %v1108, 23
        %v1110 = vsub.s32 %v1109, 127
        %v1111 = vand.u32 2147483647, %v298
        %v1112 = vand.u32 %v1111, 8388607
        %v1113 = vor.u32 %v1112, 8388608
        %v1114 = vsub.s32 0, %v1113
        %v1115 = vadd.s32 %v1110, 1
        %vm1116 = vcmp.gt.s32.totalorder %v1115, 0
        %v1117 = vsel %vm1116, %v1115, 0
        %v1118 = vshrl.u32 %v1117, 5
        %v1119 = vand.u32 %v1117, 31
        %v1120 = vsub.s32 32, %v1119
        %v1121 = vshrl.u32 683565275, %v1120
        %v1122 = vshll.u32 683565275, %v1119
        %v1123 = vshrl.u32 2475754826, %v1120
        %v1124 = vor.u32 %v1122, %v1123
        %v1125 = vshll.u32 2475754826, %v1119
        %v1126 = vshrl.u32 2131351028, %v1120
        %v1127 = vor.u32 %v1125, %v1126
        %v1128 = vshll.u32 2131351028, %v1119
        %v1129 = vshrl.u32 2102212464, %v1120
        %v1130 = vor.u32 %v1128, %v1129
        %v1131 = vshll.u32 2102212464, %v1119
        %v1132 = vshrl.u32 920167782, %v1120
        %v1133 = vor.u32 %v1131, %v1132
        %v1134 = vshll.u32 920167782, %v1119
        %v1135 = vshrl.u32 1326507024, %v1120
        %v1136 = vor.u32 %v1134, %v1135
        %vm1137 = vcmp.lt.s32.totalorder %v1118, 1
        %vm1138 = vcmp.lt.s32.totalorder %v1118, 2
        %vm1139 = vcmp.lt.s32.totalorder %v1118, 3
        %vm1140 = vcmp.lt.s32.totalorder %v1118, 4
        %v1141 = vsel %vm1137, %v1121, %v1124
        %v1142 = vsel %vm1140, %v1130, 2102212464
        %v1143 = vsel %vm1139, %v1127, %v1142
        %v1144 = vsel %vm1138, %v1141, %v1143
        %v1145 = vsel %vm1137, %v1124, %v1127
        %v1146 = vsel %vm1140, %v1133, 920167782
        %v1147 = vsel %vm1139, %v1130, %v1146
        %v1148 = vsel %vm1138, %v1145, %v1147
        %v1149 = vsel %vm1137, %v1127, %v1130
        %v1150 = vsel %vm1140, %v1136, 1326507024
        %v1151 = vsel %vm1139, %v1133, %v1150
        %v1152 = vsel %vm1138, %v1149, %v1151
        %v1153 = vshll.u32 %v1113, 8
        %v1154 = vand.u32 %v1153, 65535
        %v1155 = vshrl.u32 %v1153, 16
        %v1156 = vand.u32 %v1152, 65535
        %v1157 = vshrl.u32 %v1152, 16
        %v1158 = vmul.u32 %v1154, %v1156
        %v1159 = vmul.u32 %v1154, %v1157
        %v1160 = vmul.u32 %v1155, %v1156
        %v1161 = vmul.u32 %v1155, %v1157
        %v1162 = vshll.u32 %v1159, 16
        %v1163 = vshrl.u32 %v1159, 16
        %v1164 = vshll.u32 %v1160, 16
        %v1165 = vshrl.u32 %v1160, 16
        %vm1166 = vc.u32 %v1158, %v1162
        %v1167 = vsel %vm1166, 1, 0
        %v1168 = vadd.s32 %v1158, %v1162
        %v1169 = vadd.s32 %v1161, %v1167
        %vm1170 = vc.u32 %v1168, %v1164
        %v1171 = vsel %vm1170, 1, 0
        %v1172 = vadd.s32 %v1168, %v1164
        %v1173 = vadd.s32 %v1169, %v1171
        %v1174 = vadd.s32 %v1173, %v1163
        %v1175 = vadd.s32 %v1174, %v1165
        %v1176 = vand.u32 %v1153, 65535
        %v1177 = vshrl.u32 %v1153, 16
        %v1178 = vand.u32 %v1148, 65535
        %v1179 = vshrl.u32 %v1148, 16
        %v1180 = vmul.u32 %v1176, %v1178
        %v1181 = vmul.u32 %v1176, %v1179
        %v1182 = vmul.u32 %v1177, %v1178
        %v1183 = vmul.u32 %v1177, %v1179
        %v1184 = vshll.u32 %v1181, 16
        %v1185 = vshrl.u32 %v1181, 16
        %v1186 = vshll.u32 %v1182, 16
        %v1187 = vshrl.u32 %v1182, 16
        %vm1188 = vc.u32 %v1180, %v1184
        %v1189 = vsel %vm1188, 1, 0
        %v1190 = vadd.s32 %v1180, %v1184
        %v1191 = vadd.s32 %v1183, %v1189
        %vm1192 = vc.u32 %v1190, %v1186
        %v1193 = vsel %vm1192, 1, 0
        %v1194 = vadd.s32 %v1190, %v1186
        %v1195 = vadd.s32 %v1191, %v1193
        %v1196 = vadd.s32 %v1195, %v1185
        %v1197 = vadd.s32 %v1196, %v1187
        %v1198 = vmul.u32 %v1153, %v1144
        %v1199 = vadd.s32 %v1175, %v1194
        %vm1200 = vc.u32 %v1175, %v1194
        %v1201 = vadd.s32 %v1197, 1
        %v1202 = vsel %vm1200, %v1201, %v1197
        %v1203 = vadd.s32 %v1198, %v1202
        %v1204 = vadd.s32 %v1203, 536870912
        %v1205 = vshrl.u32 %v1204, 30
        %v1206 = vshll.u32 %v1205, 30
        %v1207 = vsub.s32 %v1203, %v1206
        %vm1208 = vcmp.lt.s32.totalorder %v1207, 0
        %v1209 = vsub.s32 0, %v1207
        %v1210 = vsel %vm1208, %v1209, %v1207
        %v1211 = vclz %v1210
        %v1212 = vsub.s32 %v1211, 2
        %vm1213 = vcmp.gt.s32.totalorder 0, %v1212
        %v1214 = vsel %vm1213, 0, %v1212
        %v1215 = vsub.s32 32, %v1214
        %v1216 = vshll.u32 %v1207, %v1214
        %v1217 = vshrl.u32 %v1199, %v1215
        %v1218 = vor.u32 %v1216, %v1217
        %v1219 = vsub.s32 4294967266, %v1214
        %v1220 = vadd.s32 %v1219, 127
        %v1221 = vshll.u32 %v1220, 23
        %v1222 = vor.u32 4788187, %v1221
        %v1223 = vand.u32 2147483647, %v1222
        %v1225 = vcvt.s32.f32 %v1218
        %v1226 = vmul.f32 %v1225, %v1223
        %v1227 = vxor.u32 %v1226, 2147483648
        %v1228 = vsel %vm1107, %v1227, %v1226
        %v1229 = vsub.s32 4, %v1205
        %v1230 = vsel %vm1107, %v1229, %v1205
        %v1231 = vsel %vm1106, %v298, %v1228
        %v1232 = vsel %vm1106, 0, %v1230
        %v1233 = vmul.f32 %v1231, %v1231
        %v1234 = vmul.f32 %v1233, -0.001358992
        %v1235 = vadd.f32 %v1234, 0.041655596
        %v1236 = vmul.f32 %v1233, %v1235
        %v1237 = vadd.f32 %v1236, -0.4999988
        %v1238 = vmul.f32 %v1233, %v1237
        %v1239 = vadd.f32 1.0, %v1238
        %v1240 = vmul.f32 %v1231, %v1231
        %v1241 = vmul.f32 %v1240, -0.00019511016
        %v1242 = vadd.f32 %v1241, 0.008332121
        %v1243 = vmul.f32 %v1240, %v1242
        %v1244 = vadd.f32 %v1243, -0.16666654
        %v1245 = vmul.f32 %v1240, %v1244
        %v1246 = vadd.f32 %v1245, 1.0
        %v1247 = vmul.f32 %v1246, %v1231
        %vm1248 = vweird.f32 %v298
        %v1249 = vadd.s32 %v1232, 3
        %v1250 = vand.u32 %v1249, 3
        %vm1251 = vcmp.lt.s32.totalorder %v1250, 2
        %vm1252 = vcmp.eq.s32.totalorder %v1250, 0
        %v1253 = vxor.u32 %v1247, 2147483648
        %v1254 = vsel %vm1252, %v1239, %v1253
        %vm1255 = vcmp.eq.s32.totalorder %v1250, 2
        %v1256 = vxor.u32 %v1239, 2147483648
        %v1257 = vsel %vm1255, %v1256, %v1247
        %v1258 = vsel %vm1251, %v1254, %v1257
        %v1259 = vsel %vm1248, nan, %v1258
        %v1260 = vand.u32 2147483647, %v301
        %vm1261 = vcmp.le.f32.partialorder %v1260, 0.7853982
        %vm1262 = vcmp.lt.s32.totalorder %v301, 0
        %v1263 = vand.u32 %v301, 2139095040
        %v1264 = vshrl.u32 %v1263, 23
        %v1265 = vsub.s32 %v1264, 127
        %v1266 = vand.u32 2147483647, %v301
        %v1267 = vand.u32 %v1266, 8388607
        %v1268 = vor.u32 %v1267, 8388608
        %v1269 = vsub.s32 0, %v1268
        %v1270 = vadd.s32 %v1265, 1
        %vm1271 = vcmp.gt.s32.totalorder %v1270, 0
        %v1272 = vsel %vm1271, %v1270, 0
        %v1273 = vshrl.u32 %v1272, 5
        %v1274 = vand.u32 %v1272, 31
        %v1275 = vsub.s32 32, %v1274
        %v1276 = vshrl.u32 683565275, %v1275
        %v1277 = vshll.u32 683565275, %v1274
        %v1278 = vshrl.u32 2475754826, %v1275
        %v1279 = vor.u32 %v1277, %v1278
        %v1280 = vshll.u32 2475754826, %v1274
        %v1281 = vshrl.u32 2131351028, %v1275
        %v1282 = vor.u32 %v1280, %v1281
        %v1283 = vshll.u32 2131351028, %v1274
        %v1284 = vshrl.u32 2102212464, %v1275
        %v1285 = vor.u32 %v1283, %v1284
        %v1286 = vshll.u32 2102212464, %v1274
        %v1287 = vshrl.u32 920167782, %v1275
        %v1288 = vor.u32 %v1286, %v1287
        %v1289 = vshll.u32 920167782, %v1274
        %v1290 = vshrl.u32 1326507024, %v1275
        %v1291 = vor.u32 %v1289, %v1290
        %vm1292 = vcmp.lt.s32.totalorder %v1273, 1
        %vm1293 = vcmp.lt.s32.totalorder %v1273, 2
        %vm1294 = vcmp.lt.s32.totalorder %v1273, 3
        %vm1295 = vcmp.lt.s32.totalorder %v1273, 4
        %v1296 = vsel %vm1292, %v1276, %v1279
        %v1297 = vsel %vm1295, %v1285, 2102212464
        %v1298 = vsel %vm1294, %v1282, %v1297
        %v1299 = vsel %vm1293, %v1296, %v1298
        %v1300 = vsel %vm1292, %v1279, %v1282
        %v1301 = vsel %vm1295, %v1288, 920167782
        %v1302 = vsel %vm1294, %v1285, %v1301
        %v1303 = vsel %vm1293, %v1300, %v1302
        %v1304 = vsel %vm1292, %v1282, %v1285
        %v1305 = vsel %vm1295, %v1291, 1326507024
        %v1306 = vsel %vm1294, %v1288, %v1305
        %v1307 = vsel %vm1293, %v1304, %v1306
        %v1308 = vshll.u32 %v1268, 8
        %v1309 = vand.u32 %v1308, 65535
        %v1310 = vshrl.u32 %v1308, 16
        %v1311 = vand.u32 %v1307, 65535
        %v1312 = vshrl.u32 %v1307, 16
        %v1313 = vmul.u32 %v1309, %v1311
        %v1314 = vmul.u32 %v1309, %v1312
        %v1315 = vmul.u32 %v1310, %v1311
        %v1316 = vmul.u32 %v1310, %v1312
        %v1317 = vshll.u32 %v1314, 16
        %v1318 = vshrl.u32 %v1314, 16
        %v1319 = vshll.u32 %v1315, 16
        %v1320 = vshrl.u32 %v1315, 16
        %vm1321 = vc.u32 %v1313, %v1317
        %v1322 = vsel %vm1321, 1, 0
        %v1323 = vadd.s32 %v1313, %v1317
        %v1324 = vadd.s32 %v1316, %v1322
        %vm1325 = vc.u32 %v1323, %v1319
        %v1326 = vsel %vm1325, 1, 0
        %v1327 = vadd.s32 %v1323, %v1319
        %v1328 = vadd.s32 %v1324, %v1326
        %v1329 = vadd.s32 %v1328, %v1318
        %v1330 = vadd.s32 %v1329, %v1320
        %v1331 = vand.u32 %v1308, 65535
        %v1332 = vshrl.u32 %v1308, 16
        %v1333 = vand.u32 %v1303, 65535
        %v1334 = vshrl.u32 %v1303, 16
        %v1335 = vmul.u32 %v1331, %v1333
        %v1336 = vmul.u32 %v1331, %v1334
        %v1337 = vmul.u32 %v1332, %v1333
        %v1338 = vmul.u32 %v1332, %v1334
        %v1339 = vshll.u32 %v1336, 16
        %v1340 = vshrl.u32 %v1336, 16
        %v1341 = vshll.u32 %v1337, 16
        %v1342 = vshrl.u32 %v1337, 16
        %vm1343 = vc.u32 %v1335, %v1339
        %v1344 = vsel %vm1343, 1, 0
        %v1345 = vadd.s32 %v1335, %v1339
        %v1346 = vadd.s32 %v1338, %v1344
        %vm1347 = vc.u32 %v1345, %v1341
        %v1348 = vsel %vm1347, 1, 0
        %v1349 = vadd.s32 %v1345, %v1341
        %v1350 = vadd.s32 %v1346, %v1348
        %v1351 = vadd.s32 %v1350, %v1340
        %v1352 = vadd.s32 %v1351, %v1342
        %v1353 = vmul.u32 %v1308, %v1299
        %v1354 = vadd.s32 %v1330, %v1349
        %vm1355 = vc.u32 %v1330, %v1349
        %v1356 = vadd.s32 %v1352, 1
        %v1357 = vsel %vm1355, %v1356, %v1352
        %v1358 = vadd.s32 %v1353, %v1357
        %v1359 = vadd.s32 %v1358, 536870912
        %v1360 = vshrl.u32 %v1359, 30
        %v1361 = vshll.u32 %v1360, 30
        %v1362 = vsub.s32 %v1358, %v1361
        %vm1363 = vcmp.lt.s32.totalorder %v1362, 0
        %v1364 = vsub.s32 0, %v1362
        %v1365 = vsel %vm1363, %v1364, %v1362
        %v1366 = vclz %v1365
        %v1367 = vsub.s32 %v1366, 2
        %vm1368 = vcmp.gt.s32.totalorder 0, %v1367
        %v1369 = vsel %vm1368, 0, %v1367
        %v1370 = vsub.s32 32, %v1369
        %v1371 = vshll.u32 %v1362, %v1369
        %v1372 = vshrl.u32 %v1354, %v1370
        %v1373 = vor.u32 %v1371, %v1372
        %v1374 = vsub.s32 4294967266, %v1369
        %v1375 = vadd.s32 %v1374, 127
        %v1376 = vshll.u32 %v1375, 23
        %v1377 = vor.u32 4788187, %v1376
        %v1378 = vand.u32 2147483647, %v1377
        %v1380 = vcvt.s32.f32 %v1373
        %v1381 = vmul.f32 %v1380, %v1378
        %v1382 = vxor.u32 %v1381, 2147483648
        %v1383 = vsel %vm1262, %v1382, %v1381
        %v1384 = vsub.s32 4, %v1360
        %v1385 = vsel %vm1262, %v1384, %v1360
        %v1386 = vsel %vm1261, %v301, %v1383
        %v1387 = vsel %vm1261, 0, %v1385
        %v1388 = vmul.f32 %v1386, %v1386
        %v1389 = vmul.f32 %v1388, -0.001358992
        %v1390 = vadd.f32 %v1389, 0.041655596
        %v1391 = vmul.f32 %v1388, %v1390
        %v1392 = vadd.f32 %v1391, -0.4999988
        %v1393 = vmul.f32 %v1388, %v1392
        %v1394 = vadd.f32 1.0, %v1393
        %v1395 = vmul.f32 %v1386, %v1386
        %v1396 = vmul.f32 %v1395, -0.00019511016
        %v1397 = vadd.f32 %v1396, 0.008332121
        %v1398 = vmul.f32 %v1395, %v1397
        %v1399 = vadd.f32 %v1398, -0.16666654
        %v1400 = vmul.f32 %v1395, %v1399
        %v1401 = vadd.f32 %v1400, 1.0
        %v1402 = vmul.f32 %v1401, %v1386
        %vm1403 = vweird.f32 %v301
        %v1404 = vadd.s32 %v1387, 3
        %v1405 = vand.u32 %v1404, 3
        %vm1406 = vcmp.lt.s32.totalorder %v1405, 2
        %vm1407 = vcmp.eq.s32.totalorder %v1405, 0
        %v1408 = vxor.u32 %v1402, 2147483648
        %v1409 = vsel %vm1407, %v1394, %v1408
        %vm1410 = vcmp.eq.s32.totalorder %v1405, 2
        %v1411 = vxor.u32 %v1394, 2147483648
        %v1412 = vsel %vm1410, %v1411, %v1402
        %v1413 = vsel %vm1406, %v1409, %v1412
        %v1414 = vsel %vm1403, nan, %v1413
        %v1415 = vand.u32 2147483647, %v304
        %vm1416 = vcmp.le.f32.partialorder %v1415, 0.7853982
        %vm1417 = vcmp.lt.s32.totalorder %v304, 0
        %v1418 = vand.u32 %v304, 2139095040
        %v1419 = vshrl.u32 %v1418, 23
        %v1420 = vsub.s32 %v1419, 127
        %v1421 = vand.u32 2147483647, %v304
        %v1422 = vand.u32 %v1421, 8388607
        %v1423 = vor.u32 %v1422, 8388608
        %v1424 = vsub.s32 0, %v1423
        %v1425 = vadd.s32 %v1420, 1
        %vm1426 = vcmp.gt.s32.totalorder %v1425, 0
        %v1427 = vsel %vm1426, %v1425, 0
        %v1428 = vshrl.u32 %v1427, 5
        %v1429 = vand.u32 %v1427, 31
        %v1430 = vsub.s32 32, %v1429
        %v1431 = vshrl.u32 683565275, %v1430
        %v1432 = vshll.u32 683565275, %v1429
        %v1433 = vshrl.u32 2475754826, %v1430
        %v1434 = vor.u32 %v1432, %v1433
        %v1435 = vshll.u32 2475754826, %v1429
        %v1436 = vshrl.u32 2131351028, %v1430
        %v1437 = vor.u32 %v1435, %v1436
        %v1438 = vshll.u32 2131351028, %v1429
        %v1439 = vshrl.u32 2102212464, %v1430
        %v1440 = vor.u32 %v1438, %v1439
        %v1441 = vshll.u32 2102212464, %v1429
        %v1442 = vshrl.u32 920167782, %v1430
        %v1443 = vor.u32 %v1441, %v1442
        %v1444 = vshll.u32 920167782, %v1429
        %v1445 = vshrl.u32 1326507024, %v1430
        %v1446 = vor.u32 %v1444, %v1445
        %vm1447 = vcmp.lt.s32.totalorder %v1428, 1
        %vm1448 = vcmp.lt.s32.totalorder %v1428, 2
        %vm1449 = vcmp.lt.s32.totalorder %v1428, 3
        %vm1450 = vcmp.lt.s32.totalorder %v1428, 4
        %v1451 = vsel %vm1447, %v1431, %v1434
        %v1452 = vsel %vm1450, %v1440, 2102212464
        %v1453 = vsel %vm1449, %v1437, %v1452
        %v1454 = vsel %vm1448, %v1451, %v1453
        %v1455 = vsel %vm1447, %v1434, %v1437
        %v1456 = vsel %vm1450, %v1443, 920167782
        %v1457 = vsel %vm1449, %v1440, %v1456
        %v1458 = vsel %vm1448, %v1455, %v1457
        %v1459 = vsel %vm1447, %v1437, %v1440
        %v1460 = vsel %vm1450, %v1446, 1326507024
        %v1461 = vsel %vm1449, %v1443, %v1460
        %v1462 = vsel %vm1448, %v1459, %v1461
        %v1463 = vshll.u32 %v1423, 8
        %v1464 = vand.u32 %v1463, 65535
        %v1465 = vshrl.u32 %v1463, 16
        %v1466 = vand.u32 %v1462, 65535
        %v1467 = vshrl.u32 %v1462, 16
        %v1468 = vmul.u32 %v1464, %v1466
        %v1469 = vmul.u32 %v1464, %v1467
        %v1470 = vmul.u32 %v1465, %v1466
        %v1471 = vmul.u32 %v1465, %v1467
        %v1472 = vshll.u32 %v1469, 16
        %v1473 = vshrl.u32 %v1469, 16
        %v1474 = vshll.u32 %v1470, 16
        %v1475 = vshrl.u32 %v1470, 16
        %vm1476 = vc.u32 %v1468, %v1472
        %v1477 = vsel %vm1476, 1, 0
        %v1478 = vadd.s32 %v1468, %v1472
        %v1479 = vadd.s32 %v1471, %v1477
        %vm1480 = vc.u32 %v1478, %v1474
        %v1481 = vsel %vm1480, 1, 0
        %v1482 = vadd.s32 %v1478, %v1474
        %v1483 = vadd.s32 %v1479, %v1481
        %v1484 = vadd.s32 %v1483, %v1473
        %v1485 = vadd.s32 %v1484, %v1475
        %v1486 = vand.u32 %v1463, 65535
        %v1487 = vshrl.u32 %v1463, 16
        %v1488 = vand.u32 %v1458, 65535
        %v1489 = vshrl.u32 %v1458, 16
        %v1490 = vmul.u32 %v1486, %v1488
        %v1491 = vmul.u32 %v1486, %v1489
        %v1492 = vmul.u32 %v1487, %v1488
        %v1493 = vmul.u32 %v1487, %v1489
        %v1494 = vshll.u32 %v1491, 16
        %v1495 = vshrl.u32 %v1491, 16
        %v1496 = vshll.u32 %v1492, 16
        %v1497 = vshrl.u32 %v1492, 16
        %vm1498 = vc.u32 %v1490, %v1494
        %v1499 = vsel %vm1498, 1, 0
        %v1500 = vadd.s32 %v1490, %v1494
        %v1501 = vadd.s32 %v1493, %v1499
        %vm1502 = vc.u32 %v1500, %v1496
        %v1503 = vsel %vm1502, 1, 0
        %v1504 = vadd.s32 %v1500, %v1496
        %v1505 = vadd.s32 %v1501, %v1503
        %v1506 = vadd.s32 %v1505, %v1495
        %v1507 = vadd.s32 %v1506, %v1497
        %v1508 = vmul.u32 %v1463, %v1454
        %v1509 = vadd.s32 %v1485, %v1504
        %vm1510 = vc.u32 %v1485, %v1504
        %v1511 = vadd.s32 %v1507, 1
        %v1512 = vsel %vm1510, %v1511, %v1507
        %v1513 = vadd.s32 %v1508, %v1512
        %v1514 = vadd.s32 %v1513, 536870912
        %v1515 = vshrl.u32 %v1514, 30
        %v1516 = vshll.u32 %v1515, 30
        %v1517 = vsub.s32 %v1513, %v1516
        %vm1518 = vcmp.lt.s32.totalorder %v1517, 0
        %v1519 = vsub.s32 0, %v1517
        %v1520 = vsel %vm1518, %v1519, %v1517
        %v1521 = vclz %v1520
        %v1522 = vsub.s32 %v1521, 2
        %vm1523 = vcmp.gt.s32.totalorder 0, %v1522
        %v1524 = vsel %vm1523, 0, %v1522
        %v1525 = vsub.s32 32, %v1524
        %v1526 = vshll.u32 %v1517, %v1524
        %v1527 = vshrl.u32 %v1509, %v1525
        %v1528 = vor.u32 %v1526, %v1527
        %v1529 = vsub.s32 4294967266, %v1524
        %v1530 = vadd.s32 %v1529, 127
        %v1531 = vshll.u32 %v1530, 23
        %v1532 = vor.u32 4788187, %v1531
        %v1533 = vand.u32 2147483647, %v1532
        %v1535 = vcvt.s32.f32 %v1528
        %v1536 = vmul.f32 %v1535, %v1533
        %v1537 = vxor.u32 %v1536, 2147483648
        %v1538 = vsel %vm1417, %v1537, %v1536
        %v1539 = vsub.s32 4, %v1515
        %v1540 = vsel %vm1417, %v1539, %v1515
        %v1541 = vsel %vm1416, %v304, %v1538
        %v1542 = vsel %vm1416, 0, %v1540
        %v1543 = vmul.f32 %v1541, %v1541
        %v1544 = vmul.f32 %v1543, -0.001358992
        %v1545 = vadd.f32 %v1544, 0.041655596
        %v1546 = vmul.f32 %v1543, %v1545
        %v1547 = vadd.f32 %v1546, -0.4999988
        %v1548 = vmul.f32 %v1543, %v1547
        %v1549 = vadd.f32 1.0, %v1548
        %v1550 = vmul.f32 %v1541, %v1541
        %v1551 = vmul.f32 %v1550, -0.00019511016
        %v1552 = vadd.f32 %v1551, 0.008332121
        %v1553 = vmul.f32 %v1550, %v1552
        %v1554 = vadd.f32 %v1553, -0.16666654
        %v1555 = vmul.f32 %v1550, %v1554
        %v1556 = vadd.f32 %v1555, 1.0
        %v1557 = vmul.f32 %v1556, %v1541
        %vm1558 = vweird.f32 %v304
        %v1559 = vadd.s32 %v1542, 3
        %v1560 = vand.u32 %v1559, 3
        %vm1561 = vcmp.lt.s32.totalorder %v1560, 2
        %vm1562 = vcmp.eq.s32.totalorder %v1560, 0
        %v1563 = vxor.u32 %v1557, 2147483648
        %v1564 = vsel %vm1562, %v1549, %v1563
        %vm1565 = vcmp.eq.s32.totalorder %v1560, 2
        %v1566 = vxor.u32 %v1549, 2147483648
        %v1567 = vsel %vm1565, %v1566, %v1557
        %v1568 = vsel %vm1561, %v1564, %v1567
        %v1569 = vsel %vm1558, nan, %v1568
        %v1570 = vand.u32 2147483647, %v307
        %vm1571 = vcmp.le.f32.partialorder %v1570, 0.7853982
        %vm1572 = vcmp.lt.s32.totalorder %v307, 0
        %v1573 = vand.u32 %v307, 2139095040
        %v1574 = vshrl.u32 %v1573, 23
        %v1575 = vsub.s32 %v1574, 127
        %v1576 = vand.u32 2147483647, %v307
        %v1577 = vand.u32 %v1576, 8388607
        %v1578 = vor.u32 %v1577, 8388608
        %v1579 = vsub.s32 0, %v1578
        %v1580 = vadd.s32 %v1575, 1
        %vm1581 = vcmp.gt.s32.totalorder %v1580, 0
        %v1582 = vsel %vm1581, %v1580, 0
        %v1583 = vshrl.u32 %v1582, 5
        %v1584 = vand.u32 %v1582, 31
        %v1585 = vsub.s32 32, %v1584
        %v1586 = vshrl.u32 683565275, %v1585
        %v1587 = vshll.u32 683565275, %v1584
        %v1588 = vshrl.u32 2475754826, %v1585
        %v1589 = vor.u32 %v1587, %v1588
        %v1590 = vshll.u32 2475754826, %v1584
        %v1591 = vshrl.u32 2131351028, %v1585
        %v1592 = vor.u32 %v1590, %v1591
        %v1593 = vshll.u32 2131351028, %v1584
        %v1594 = vshrl.u32 2102212464, %v1585
        %v1595 = vor.u32 %v1593, %v1594
        %v1596 = vshll.u32 2102212464, %v1584
        %v1597 = vshrl.u32 920167782, %v1585
        %v1598 = vor.u32 %v1596, %v1597
        %v1599 = vshll.u32 920167782, %v1584
        %v1600 = vshrl.u32 1326507024, %v1585
        %v1601 = vor.u32 %v1599, %v1600
        %vm1602 = vcmp.lt.s32.totalorder %v1583, 1
        %vm1603 = vcmp.lt.s32.totalorder %v1583, 2
        %vm1604 = vcmp.lt.s32.totalorder %v1583, 3
        %vm1605 = vcmp.lt.s32.totalorder %v1583, 4
        %v1606 = vsel %vm1602, %v1586, %v1589
        %v1607 = vsel %vm1605, %v1595, 2102212464
        %v1608 = vsel %vm1604, %v1592, %v1607
        %v1609 = vsel %vm1603, %v1606, %v1608
        %v1610 = vsel %vm1602, %v1589, %v1592
        %v1611 = vsel %vm1605, %v1598, 920167782
        %v1612 = vsel %vm1604, %v1595, %v1611
        %v1613 = vsel %vm1603, %v1610, %v1612
        %v1614 = vsel %vm1602, %v1592, %v1595
        %v1615 = vsel %vm1605, %v1601, 1326507024
        %v1616 = vsel %vm1604, %v1598, %v1615
        %v1617 = vsel %vm1603, %v1614, %v1616
        %v1618 = vshll.u32 %v1578, 8
        %v1619 = vand.u32 %v1618, 65535
        %v1620 = vshrl.u32 %v1618, 16
        %v1621 = vand.u32 %v1617, 65535
        %v1622 = vshrl.u32 %v1617, 16
        %v1623 = vmul.u32 %v1619, %v1621
        %v1624 = vmul.u32 %v1619, %v1622
        %v1625 = vmul.u32 %v1620, %v1621
        %v1626 = vmul.u32 %v1620, %v1622
        %v1627 = vshll.u32 %v1624, 16
        %v1628 = vshrl.u32 %v1624, 16
        %v1629 = vshll.u32 %v1625, 16
        %v1630 = vshrl.u32 %v1625, 16
        %vm1631 = vc.u32 %v1623, %v1627
        %v1632 = vsel %vm1631, 1, 0
        %v1633 = vadd.s32 %v1623, %v1627
        %v1634 = vadd.s32 %v1626, %v1632
        %vm1635 = vc.u32 %v1633, %v1629
        %v1636 = vsel %vm1635, 1, 0
        %v1637 = vadd.s32 %v1633, %v1629
        %v1638 = vadd.s32 %v1634, %v1636
        %v1639 = vadd.s32 %v1638, %v1628
        %v1640 = vadd.s32 %v1639, %v1630
        %v1641 = vand.u32 %v1618, 65535
        %v1642 = vshrl.u32 %v1618, 16
        %v1643 = vand.u32 %v1613, 65535
        %v1644 = vshrl.u32 %v1613, 16
        %v1645 = vmul.u32 %v1641, %v1643
        %v1646 = vmul.u32 %v1641, %v1644
        %v1647 = vmul.u32 %v1642, %v1643
        %v1648 = vmul.u32 %v1642, %v1644
        %v1649 = vshll.u32 %v1646, 16
        %v1650 = vshrl.u32 %v1646, 16
        %v1651 = vshll.u32 %v1647, 16
        %v1652 = vshrl.u32 %v1647, 16
        %vm1653 = vc.u32 %v1645, %v1649
        %v1654 = vsel %vm1653, 1, 0
        %v1655 = vadd.s32 %v1645, %v1649
        %v1656 = vadd.s32 %v1648, %v1654
        %vm1657 = vc.u32 %v1655, %v1651
        %v1658 = vsel %vm1657, 1, 0
        %v1659 = vadd.s32 %v1655, %v1651
        %v1660 = vadd.s32 %v1656, %v1658
        %v1661 = vadd.s32 %v1660, %v1650
        %v1662 = vadd.s32 %v1661, %v1652
        %v1663 = vmul.u32 %v1618, %v1609
        %v1664 = vadd.s32 %v1640, %v1659
        %vm1665 = vc.u32 %v1640, %v1659
        %v1666 = vadd.s32 %v1662, 1
        %v1667 = vsel %vm1665, %v1666, %v1662
        %v1668 = vadd.s32 %v1663, %v1667
        %v1669 = vadd.s32 %v1668, 536870912
        %v1670 = vshrl.u32 %v1669, 30
        %v1671 = vshll.u32 %v1670, 30
        %v1672 = vsub.s32 %v1668, %v1671
        %vm1673 = vcmp.lt.s32.totalorder %v1672, 0
        %v1674 = vsub.s32 0, %v1672
        %v1675 = vsel %vm1673, %v1674, %v1672
        %v1676 = vclz %v1675
        %v1677 = vsub.s32 %v1676, 2
        %vm1678 = vcmp.gt.s32.totalorder 0, %v1677
        %v1679 = vsel %vm1678, 0, %v1677
        %v1680 = vsub.s32 32, %v1679
        %v1681 = vshll.u32 %v1672, %v1679
        %v1682 = vshrl.u32 %v1664, %v1680
        %v1683 = vor.u32 %v1681, %v1682
        %v1684 = vsub.s32 4294967266, %v1679
        %v1685 = vadd.s32 %v1684, 127
        %v1686 = vshll.u32 %v1685, 23
        %v1687 = vor.u32 4788187, %v1686
        %v1688 = vand.u32 2147483647, %v1687
        %v1690 = vcvt.s32.f32 %v1683
        %v1691 = vmul.f32 %v1690, %v1688
        %v1692 = vxor.u32 %v1691, 2147483648
        %v1693 = vsel %vm1572, %v1692, %v1691
        %v1694 = vsub.s32 4, %v1670
        %v1695 = vsel %vm1572, %v1694, %v1670
        %v1696 = vsel %vm1571, %v307, %v1693
        %v1697 = vsel %vm1571, 0, %v1695
        %v1698 = vmul.f32 %v1696, %v1696
        %v1699 = vmul.f32 %v1698, -0.001358992
        %v1700 = vadd.f32 %v1699, 0.041655596
        %v1701 = vmul.f32 %v1698, %v1700
        %v1702 = vadd.f32 %v1701, -0.4999988
        %v1703 = vmul.f32 %v1698, %v1702
        %v1704 = vadd.f32 1.0, %v1703
        %v1705 = vmul.f32 %v1696, %v1696
        %v1706 = vmul.f32 %v1705, -0.00019511016
        %v1707 = vadd.f32 %v1706, 0.008332121
        %v1708 = vmul.f32 %v1705, %v1707
        %v1709 = vadd.f32 %v1708, -0.16666654
        %v1710 = vmul.f32 %v1705, %v1709
        %v1711 = vadd.f32 %v1710, 1.0
        %v1712 = vmul.f32 %v1711, %v1696
        %vm1713 = vweird.f32 %v307
        %v1714 = vadd.s32 %v1697, 3
        %v1715 = vand.u32 %v1714, 3
        %vm1716 = vcmp.lt.s32.totalorder %v1715, 2
        %vm1717 = vcmp.eq.s32.totalorder %v1715, 0
        %v1718 = vxor.u32 %v1712, 2147483648
        %v1719 = vsel %vm1717, %v1704, %v1718
        %vm1720 = vcmp.eq.s32.totalorder %v1715, 2
        %v1721 = vxor.u32 %v1704, 2147483648
        %v1722 = vsel %vm1720, %v1721, %v1712
        %v1723 = vsel %vm1716, %v1719, %v1722
        %v1724 = vsel %vm1713, nan, %v1723
        %v1725 = vand.u32 2147483647, %v310
        %vm1726 = vcmp.le.f32.partialorder %v1725, 0.7853982
        %vm1727 = vcmp.lt.s32.totalorder %v310, 0
        %v1728 = vand.u32 %v310, 2139095040
        %v1729 = vshrl.u32 %v1728, 23
        %v1730 = vsub.s32 %v1729, 127
        %v1731 = vand.u32 2147483647, %v310
        %v1732 = vand.u32 %v1731, 8388607
        %v1733 = vor.u32 %v1732, 8388608
        %v1734 = vsub.s32 0, %v1733
        %v1735 = vadd.s32 %v1730, 1
        %vm1736 = vcmp.gt.s32.totalorder %v1735, 0
        %v1737 = vsel %vm1736, %v1735, 0
        %v1738 = vshrl.u32 %v1737, 5
        %v1739 = vand.u32 %v1737, 31
        %v1740 = vsub.s32 32, %v1739
        %v1741 = vshrl.u32 683565275, %v1740
        %v1742 = vshll.u32 683565275, %v1739
        %v1743 = vshrl.u32 2475754826, %v1740
        %v1744 = vor.u32 %v1742, %v1743
        %v1745 = vshll.u32 2475754826, %v1739
        %v1746 = vshrl.u32 2131351028, %v1740
        %v1747 = vor.u32 %v1745, %v1746
        %v1748 = vshll.u32 2131351028, %v1739
        %v1749 = vshrl.u32 2102212464, %v1740
        %v1750 = vor.u32 %v1748, %v1749
        %v1751 = vshll.u32 2102212464, %v1739
        %v1752 = vshrl.u32 920167782, %v1740
        %v1753 = vor.u32 %v1751, %v1752
        %v1754 = vshll.u32 920167782, %v1739
        %v1755 = vshrl.u32 1326507024, %v1740
        %v1756 = vor.u32 %v1754, %v1755
        %vm1757 = vcmp.lt.s32.totalorder %v1738, 1
        %vm1758 = vcmp.lt.s32.totalorder %v1738, 2
        %vm1759 = vcmp.lt.s32.totalorder %v1738, 3
        %vm1760 = vcmp.lt.s32.totalorder %v1738, 4
        %v1761 = vsel %vm1757, %v1741, %v1744
        %v1762 = vsel %vm1760, %v1750, 2102212464
        %v1763 = vsel %vm1759, %v1747, %v1762
        %v1764 = vsel %vm1758, %v1761, %v1763
        %v1765 = vsel %vm1757, %v1744, %v1747
        %v1766 = vsel %vm1760, %v1753, 920167782
        %v1767 = vsel %vm1759, %v1750, %v1766
        %v1768 = vsel %vm1758, %v1765, %v1767
        %v1769 = vsel %vm1757, %v1747, %v1750
        %v1770 = vsel %vm1760, %v1756, 1326507024
        %v1771 = vsel %vm1759, %v1753, %v1770
        %v1772 = vsel %vm1758, %v1769, %v1771
        %v1773 = vshll.u32 %v1733, 8
        %v1774 = vand.u32 %v1773, 65535
        %v1775 = vshrl.u32 %v1773, 16
        %v1776 = vand.u32 %v1772, 65535
        %v1777 = vshrl.u32 %v1772, 16
        %v1778 = vmul.u32 %v1774, %v1776
        %v1779 = vmul.u32 %v1774, %v1777
        %v1780 = vmul.u32 %v1775, %v1776
        %v1781 = vmul.u32 %v1775, %v1777
        %v1782 = vshll.u32 %v1779, 16
        %v1783 = vshrl.u32 %v1779, 16
        %v1784 = vshll.u32 %v1780, 16
        %v1785 = vshrl.u32 %v1780, 16
        %vm1786 = vc.u32 %v1778, %v1782
        %v1787 = vsel %vm1786, 1, 0
        %v1788 = vadd.s32 %v1778, %v1782
        %v1789 = vadd.s32 %v1781, %v1787
        %vm1790 = vc.u32 %v1788, %v1784
        %v1791 = vsel %vm1790, 1, 0
        %v1792 = vadd.s32 %v1788, %v1784
        %v1793 = vadd.s32 %v1789, %v1791
        %v1794 = vadd.s32 %v1793, %v1783
        %v1795 = vadd.s32 %v1794, %v1785
        %v1796 = vand.u32 %v1773, 65535
        %v1797 = vshrl.u32 %v1773, 16
        %v1798 = vand.u32 %v1768, 65535
        %v1799 = vshrl.u32 %v1768, 16
        %v1800 = vmul.u32 %v1796, %v1798
        %v1801 = vmul.u32 %v1796, %v1799
        %v1802 = vmul.u32 %v1797, %v1798
        %v1803 = vmul.u32 %v1797, %v1799
        %v1804 = vshll.u32 %v1801, 16
        %v1805 = vshrl.u32 %v1801, 16
        %v1806 = vshll.u32 %v1802, 16
        %v1807 = vshrl.u32 %v1802, 16
        %vm1808 = vc.u32 %v1800, %v1804
        %v1809 = vsel %vm1808, 1, 0
        %v1810 = vadd.s32 %v1800, %v1804
        %v1811 = vadd.s32 %v1803, %v1809
        %vm1812 = vc.u32 %v1810, %v1806
        %v1813 = vsel %vm1812, 1, 0
        %v1814 = vadd.s32 %v1810, %v1806
        %v1815 = vadd.s32 %v1811, %v1813
        %v1816 = vadd.s32 %v1815, %v1805
        %v1817 = vadd.s32 %v1816, %v1807
        %v1818 = vmul.u32 %v1773, %v1764
        %v1819 = vadd.s32 %v1795, %v1814
        %vm1820 = vc.u32 %v1795, %v1814
        %v1821 = vadd.s32 %v1817, 1
        %v1822 = vsel %vm1820, %v1821, %v1817
        %v1823 = vadd.s32 %v1818, %v1822
        %v1824 = vadd.s32 %v1823, 536870912
        %v1825 = vshrl.u32 %v1824, 30
        %v1826 = vshll.u32 %v1825, 30
        %v1827 = vsub.s32 %v1823, %v1826
        %vm1828 = vcmp.lt.s32.totalorder %v1827, 0
        %v1829 = vsub.s32 0, %v1827
        %v1830 = vsel %vm1828, %v1829, %v1827
        %v1831 = vclz %v1830
        %v1832 = vsub.s32 %v1831, 2
        %vm1833 = vcmp.gt.s32.totalorder 0, %v1832
        %v1834 = vsel %vm1833, 0, %v1832
        %v1835 = vsub.s32 32, %v1834
        %v1836 = vshll.u32 %v1827, %v1834
        %v1837 = vshrl.u32 %v1819, %v1835
        %v1838 = vor.u32 %v1836, %v1837
        %v1839 = vsub.s32 4294967266, %v1834
        %v1840 = vadd.s32 %v1839, 127
        %v1841 = vshll.u32 %v1840, 23
        %v1842 = vor.u32 4788187, %v1841
        %v1843 = vand.u32 2147483647, %v1842
        %v1845 = vcvt.s32.f32 %v1838
        %v1846 = vmul.f32 %v1845, %v1843
        %v1847 = vxor.u32 %v1846, 2147483648
        %v1848 = vsel %vm1727, %v1847, %v1846
        %v1849 = vsub.s32 4, %v1825
        %v1850 = vsel %vm1727, %v1849, %v1825
        %v1851 = vsel %vm1726, %v310, %v1848
        %v1852 = vsel %vm1726, 0, %v1850
        %v1853 = vmul.f32 %v1851, %v1851
        %v1854 = vmul.f32 %v1853, -0.001358992
        %v1855 = vadd.f32 %v1854, 0.041655596
        %v1856 = vmul.f32 %v1853, %v1855
        %v1857 = vadd.f32 %v1856, -0.4999988
        %v1858 = vmul.f32 %v1853, %v1857
        %v1859 = vadd.f32 1.0, %v1858
        %v1860 = vmul.f32 %v1851, %v1851
        %v1861 = vmul.f32 %v1860, -0.00019511016
        %v1862 = vadd.f32 %v1861, 0.008332121
        %v1863 = vmul.f32 %v1860, %v1862
        %v1864 = vadd.f32 %v1863, -0.16666654
        %v1865 = vmul.f32 %v1860, %v1864
        %v1866 = vadd.f32 %v1865, 1.0
        %v1867 = vmul.f32 %v1866, %v1851
        %vm1868 = vweird.f32 %v310
        %v1869 = vadd.s32 %v1852, 3
        %v1870 = vand.u32 %v1869, 3
        %vm1871 = vcmp.lt.s32.totalorder %v1870, 2
        %vm1872 = vcmp.eq.s32.totalorder %v1870, 0
        %v1873 = vxor.u32 %v1867, 2147483648
        %v1874 = vsel %vm1872, %v1859, %v1873
        %vm1875 = vcmp.eq.s32.totalorder %v1870, 2
        %v1876 = vxor.u32 %v1859, 2147483648
        %v1877 = vsel %vm1875, %v1876, %v1867
        %v1878 = vsel %vm1871, %v1874, %v1877
        %v1879 = vsel %vm1868, nan, %v1878
        %v1880 = vand.u32 2147483647, %v313
        %vm1881 = vcmp.le.f32.partialorder %v1880, 0.7853982
        %vm1882 = vcmp.lt.s32.totalorder %v313, 0
        %v1883 = vand.u32 %v313, 2139095040
        %v1884 = vshrl.u32 %v1883, 23
        %v1885 = vsub.s32 %v1884, 127
        %v1886 = vand.u32 2147483647, %v313
        %v1887 = vand.u32 %v1886, 8388607
        %v1888 = vor.u32 %v1887, 8388608
        %v1889 = vsub.s32 0, %v1888
        %v1890 = vadd.s32 %v1885, 1
        %vm1891 = vcmp.gt.s32.totalorder %v1890, 0
        %v1892 = vsel %vm1891, %v1890, 0
        %v1893 = vshrl.u32 %v1892, 5
        %v1894 = vand.u32 %v1892, 31
        %v1895 = vsub.s32 32, %v1894
        %v1896 = vshrl.u32 683565275, %v1895
        %v1897 = vshll.u32 683565275, %v1894
        %v1898 = vshrl.u32 2475754826, %v1895
        %v1899 = vor.u32 %v1897, %v1898
        %v1900 = vshll.u32 2475754826, %v1894
        %v1901 = vshrl.u32 2131351028, %v1895
        %v1902 = vor.u32 %v1900, %v1901
        %v1903 = vshll.u32 2131351028, %v1894
        %v1904 = vshrl.u32 2102212464, %v1895
        %v1905 = vor.u32 %v1903, %v1904
        %v1906 = vshll.u32 2102212464, %v1894
        %v1907 = vshrl.u32 920167782, %v1895
        %v1908 = vor.u32 %v1906, %v1907
        %v1909 = vshll.u32 920167782, %v1894
        %v1910 = vshrl.u32 1326507024, %v1895
        %v1911 = vor.u32 %v1909, %v1910
        %vm1912 = vcmp.lt.s32.totalorder %v1893, 1
        %vm1913 = vcmp.lt.s32.totalorder %v1893, 2
        %vm1914 = vcmp.lt.s32.totalorder %v1893, 3
        %vm1915 = vcmp.lt.s32.totalorder %v1893, 4
        %v1916 = vsel %vm1912, %v1896, %v1899
        %v1917 = vsel %vm1915, %v1905, 2102212464
        %v1918 = vsel %vm1914, %v1902, %v1917
        %v1919 = vsel %vm1913, %v1916, %v1918
        %v1920 = vsel %vm1912, %v1899, %v1902
        %v1921 = vsel %vm1915, %v1908, 920167782
        %v1922 = vsel %vm1914, %v1905, %v1921
        %v1923 = vsel %vm1913, %v1920, %v1922
        %v1924 = vsel %vm1912, %v1902, %v1905
        %v1925 = vsel %vm1915, %v1911, 1326507024
        %v1926 = vsel %vm1914, %v1908, %v1925
        %v1927 = vsel %vm1913, %v1924, %v1926
        %v1928 = vshll.u32 %v1888, 8
        %v1929 = vand.u32 %v1928, 65535
        %v1930 = vshrl.u32 %v1928, 16
        %v1931 = vand.u32 %v1927, 65535
        %v1932 = vshrl.u32 %v1927, 16
        %v1933 = vmul.u32 %v1929, %v1931
        %v1934 = vmul.u32 %v1929, %v1932
        %v1935 = vmul.u32 %v1930, %v1931
        %v1936 = vmul.u32 %v1930, %v1932
        %v1937 = vshll.u32 %v1934, 16
        %v1938 = vshrl.u32 %v1934, 16
        %v1939 = vshll.u32 %v1935, 16
        %v1940 = vshrl.u32 %v1935, 16
        %vm1941 = vc.u32 %v1933, %v1937
        %v1942 = vsel %vm1941, 1, 0
        %v1943 = vadd.s32 %v1933, %v1937
        %v1944 = vadd.s32 %v1936, %v1942
        %vm1945 = vc.u32 %v1943, %v1939
        %v1946 = vsel %vm1945, 1, 0
        %v1947 = vadd.s32 %v1943, %v1939
        %v1948 = vadd.s32 %v1944, %v1946
        %v1949 = vadd.s32 %v1948, %v1938
        %v1950 = vadd.s32 %v1949, %v1940
        %v1951 = vand.u32 %v1928, 65535
        %v1952 = vshrl.u32 %v1928, 16
        %v1953 = vand.u32 %v1923, 65535
        %v1954 = vshrl.u32 %v1923, 16
        %v1955 = vmul.u32 %v1951, %v1953
        %v1956 = vmul.u32 %v1951, %v1954
        %v1957 = vmul.u32 %v1952, %v1953
        %v1958 = vmul.u32 %v1952, %v1954
        %v1959 = vshll.u32 %v1956, 16
        %v1960 = vshrl.u32 %v1956, 16
        %v1961 = vshll.u32 %v1957, 16
        %v1962 = vshrl.u32 %v1957, 16
        %vm1963 = vc.u32 %v1955, %v1959
        %v1964 = vsel %vm1963, 1, 0
        %v1965 = vadd.s32 %v1955, %v1959
        %v1966 = vadd.s32 %v1958, %v1964
        %vm1967 = vc.u32 %v1965, %v1961
        %v1968 = vsel %vm1967, 1, 0
        %v1969 = vadd.s32 %v1965, %v1961
        %v1970 = vadd.s32 %v1966, %v1968
        %v1971 = vadd.s32 %v1970, %v1960
        %v1972 = vadd.s32 %v1971, %v1962
        %v1973 = vmul.u32 %v1928, %v1919
        %v1974 = vadd.s32 %v1950, %v1969
        %vm1975 = vc.u32 %v1950, %v1969
        %v1976 = vadd.s32 %v1972, 1
        %v1977 = vsel %vm1975, %v1976, %v1972
        %v1978 = vadd.s32 %v1973, %v1977
        %v1979 = vadd.s32 %v1978, 536870912
        %v1980 = vshrl.u32 %v1979, 30
        %v1981 = vshll.u32 %v1980, 30
        %v1982 = vsub.s32 %v1978, %v1981
        %vm1983 = vcmp.lt.s32.totalorder %v1982, 0
        %v1984 = vsub.s32 0, %v1982
        %v1985 = vsel %vm1983, %v1984, %v1982
        %v1986 = vclz %v1985
        %v1987 = vsub.s32 %v1986, 2
        %vm1988 = vcmp.gt.s32.totalorder 0, %v1987
        %v1989 = vsel %vm1988, 0, %v1987
        %v1990 = vsub.s32 32, %v1989
        %v1991 = vshll.u32 %v1982, %v1989
        %v1992 = vshrl.u32 %v1974, %v1990
        %v1993 = vor.u32 %v1991, %v1992
        %v1994 = vsub.s32 4294967266, %v1989
        %v1995 = vadd.s32 %v1994, 127
        %v1996 = vshll.u32 %v1995, 23
        %v1997 = vor.u32 4788187, %v1996
        %v1998 = vand.u32 2147483647, %v1997
        %v2000 = vcvt.s32.f32 %v1993
        %v2001 = vmul.f32 %v2000, %v1998
        %v2002 = vxor.u32 %v2001, 2147483648
        %v2003 = vsel %vm1882, %v2002, %v2001
        %v2004 = vsub.s32 4, %v1980
        %v2005 = vsel %vm1882, %v2004, %v1980
        %v2006 = vsel %vm1881, %v313, %v2003
        %v2007 = vsel %vm1881, 0, %v2005
        %v2008 = vmul.f32 %v2006, %v2006
        %v2009 = vmul.f32 %v2008, -0.001358992
        %v2010 = vadd.f32 %v2009, 0.041655596
        %v2011 = vmul.f32 %v2008, %v2010
        %v2012 = vadd.f32 %v2011, -0.4999988
        %v2013 = vmul.f32 %v2008, %v2012
        %v2014 = vadd.f32 1.0, %v2013
        %v2015 = vmul.f32 %v2006, %v2006
        %v2016 = vmul.f32 %v2015, -0.00019511016
        %v2017 = vadd.f32 %v2016, 0.008332121
        %v2018 = vmul.f32 %v2015, %v2017
        %v2019 = vadd.f32 %v2018, -0.16666654
        %v2020 = vmul.f32 %v2015, %v2019
        %v2021 = vadd.f32 %v2020, 1.0
        %v2022 = vmul.f32 %v2021, %v2006
        %vm2023 = vweird.f32 %v313
        %v2024 = vadd.s32 %v2007, 3
        %v2025 = vand.u32 %v2024, 3
        %vm2026 = vcmp.lt.s32.totalorder %v2025, 2
        %vm2027 = vcmp.eq.s32.totalorder %v2025, 0
        %v2028 = vxor.u32 %v2022, 2147483648
        %v2029 = vsel %vm2027, %v2014, %v2028
        %vm2030 = vcmp.eq.s32.totalorder %v2025, 2
        %v2031 = vxor.u32 %v2014, 2147483648
        %v2032 = vsel %vm2030, %v2031, %v2022
        %v2033 = vsel %vm2026, %v2029, %v2032
        %v2034 = vsel %vm2023, nan, %v2033
        %v2035 = vand.u32 2147483647, %v316
        %vm2036 = vcmp.le.f32.partialorder %v2035, 0.7853982
        %vm2037 = vcmp.lt.s32.totalorder %v316, 0
        %v2038 = vand.u32 %v316, 2139095040
        %v2039 = vshrl.u32 %v2038, 23
        %v2040 = vsub.s32 %v2039, 127
        %v2041 = vand.u32 2147483647, %v316
        %v2042 = vand.u32 %v2041, 8388607
        %v2043 = vor.u32 %v2042, 8388608
        %v2044 = vsub.s32 0, %v2043
        %v2045 = vadd.s32 %v2040, 1
        %vm2046 = vcmp.gt.s32.totalorder %v2045, 0
        %v2047 = vsel %vm2046, %v2045, 0
        %v2048 = vshrl.u32 %v2047, 5
        %v2049 = vand.u32 %v2047, 31
        %v2050 = vsub.s32 32, %v2049
        %v2051 = vshrl.u32 683565275, %v2050
        %v2052 = vshll.u32 683565275, %v2049
        %v2053 = vshrl.u32 2475754826, %v2050
        %v2054 = vor.u32 %v2052, %v2053
        %v2055 = vshll.u32 2475754826, %v2049
        %v2056 = vshrl.u32 2131351028, %v2050
        %v2057 = vor.u32 %v2055, %v2056
        %v2058 = vshll.u32 2131351028, %v2049
        %v2059 = vshrl.u32 2102212464, %v2050
        %v2060 = vor.u32 %v2058, %v2059
        %v2061 = vshll.u32 2102212464, %v2049
        %v2062 = vshrl.u32 920167782, %v2050
        %v2063 = vor.u32 %v2061, %v2062
        %v2064 = vshll.u32 920167782, %v2049
        %v2065 = vshrl.u32 1326507024, %v2050
        %v2066 = vor.u32 %v2064, %v2065
        %vm2067 = vcmp.lt.s32.totalorder %v2048, 1
        %vm2068 = vcmp.lt.s32.totalorder %v2048, 2
        %vm2069 = vcmp.lt.s32.totalorder %v2048, 3
        %vm2070 = vcmp.lt.s32.totalorder %v2048, 4
        %v2071 = vsel %vm2067, %v2051, %v2054
        %v2072 = vsel %vm2070, %v2060, 2102212464
        %v2073 = vsel %vm2069, %v2057, %v2072
        %v2074 = vsel %vm2068, %v2071, %v2073
        %v2075 = vsel %vm2067, %v2054, %v2057
        %v2076 = vsel %vm2070, %v2063, 920167782
        %v2077 = vsel %vm2069, %v2060, %v2076
        %v2078 = vsel %vm2068, %v2075, %v2077
        %v2079 = vsel %vm2067, %v2057, %v2060
        %v2080 = vsel %vm2070, %v2066, 1326507024
        %v2081 = vsel %vm2069, %v2063, %v2080
        %v2082 = vsel %vm2068, %v2079, %v2081
        %v2083 = vshll.u32 %v2043, 8
        %v2084 = vand.u32 %v2083, 65535
        %v2085 = vshrl.u32 %v2083, 16
        %v2086 = vand.u32 %v2082, 65535
        %v2087 = vshrl.u32 %v2082, 16
        %v2088 = vmul.u32 %v2084, %v2086
        %v2089 = vmul.u32 %v2084, %v2087
        %v2090 = vmul.u32 %v2085, %v2086
        %v2091 = vmul.u32 %v2085, %v2087
        %v2092 = vshll.u32 %v2089, 16
        %v2093 = vshrl.u32 %v2089, 16
        %v2094 = vshll.u32 %v2090, 16
        %v2095 = vshrl.u32 %v2090, 16
        %vm2096 = vc.u32 %v2088, %v2092
        %v2097 = vsel %vm2096, 1, 0
        %v2098 = vadd.s32 %v2088, %v2092
        %v2099 = vadd.s32 %v2091, %v2097
        %vm2100 = vc.u32 %v2098, %v2094
        %v2101 = vsel %vm2100, 1, 0
        %v2102 = vadd.s32 %v2098, %v2094
        %v2103 = vadd.s32 %v2099, %v2101
        %v2104 = vadd.s32 %v2103, %v2093
        %v2105 = vadd.s32 %v2104, %v2095
        %v2106 = vand.u32 %v2083, 65535
        %v2107 = vshrl.u32 %v2083, 16
        %v2108 = vand.u32 %v2078, 65535
        %v2109 = vshrl.u32 %v2078, 16
        %v2110 = vmul.u32 %v2106, %v2108
        %v2111 = vmul.u32 %v2106, %v2109
        %v2112 = vmul.u32 %v2107, %v2108
        %v2113 = vmul.u32 %v2107, %v2109
        %v2114 = vshll.u32 %v2111, 16
        %v2115 = vshrl.u32 %v2111, 16
        %v2116 = vshll.u32 %v2112, 16
        %v2117 = vshrl.u32 %v2112, 16
        %vm2118 = vc.u32 %v2110, %v2114
        %v2119 = vsel %vm2118, 1, 0
        %v2120 = vadd.s32 %v2110, %v2114
        %v2121 = vadd.s32 %v2113, %v2119
        %vm2122 = vc.u32 %v2120, %v2116
        %v2123 = vsel %vm2122, 1, 0
        %v2124 = vadd.s32 %v2120, %v2116
        %v2125 = vadd.s32 %v2121, %v2123
        %v2126 = vadd.s32 %v2125, %v2115
        %v2127 = vadd.s32 %v2126, %v2117
        %v2128 = vmul.u32 %v2083, %v2074
        %v2129 = vadd.s32 %v2105, %v2124
        %vm2130 = vc.u32 %v2105, %v2124
        %v2131 = vadd.s32 %v2127, 1
        %v2132 = vsel %vm2130, %v2131, %v2127
        %v2133 = vadd.s32 %v2128, %v2132
        %v2134 = vadd.s32 %v2133, 536870912
        %v2135 = vshrl.u32 %v2134, 30
        %v2136 = vshll.u32 %v2135, 30
        %v2137 = vsub.s32 %v2133, %v2136
        %vm2138 = vcmp.lt.s32.totalorder %v2137, 0
        %v2139 = vsub.s32 0, %v2137
        %v2140 = vsel %vm2138, %v2139, %v2137
        %v2141 = vclz %v2140
        %v2142 = vsub.s32 %v2141, 2
        %vm2143 = vcmp.gt.s32.totalorder 0, %v2142
        %v2144 = vsel %vm2143, 0, %v2142
        %v2145 = vsub.s32 32, %v2144
        %v2146 = vshll.u32 %v2137, %v2144
        %v2147 = vshrl.u32 %v2129, %v2145
        %v2148 = vor.u32 %v2146, %v2147
        %v2149 = vsub.s32 4294967266, %v2144
        %v2150 = vadd.s32 %v2149, 127
        %v2151 = vshll.u32 %v2150, 23
        %v2152 = vor.u32 4788187, %v2151
        %v2153 = vand.u32 2147483647, %v2152
        %v2155 = vcvt.s32.f32 %v2148
        %v2156 = vmul.f32 %v2155, %v2153
        %v2157 = vxor.u32 %v2156, 2147483648
        %v2158 = vsel %vm2037, %v2157, %v2156
        %v2159 = vsub.s32 4, %v2135
        %v2160 = vsel %vm2037, %v2159, %v2135
        %v2161 = vsel %vm2036, %v316, %v2158
        %v2162 = vsel %vm2036, 0, %v2160
        %v2163 = vmul.f32 %v2161, %v2161
        %v2164 = vmul.f32 %v2163, -0.001358992
        %v2165 = vadd.f32 %v2164, 0.041655596
        %v2166 = vmul.f32 %v2163, %v2165
        %v2167 = vadd.f32 %v2166, -0.4999988
        %v2168 = vmul.f32 %v2163, %v2167
        %v2169 = vadd.f32 1.0, %v2168
        %v2170 = vmul.f32 %v2161, %v2161
        %v2171 = vmul.f32 %v2170, -0.00019511016
        %v2172 = vadd.f32 %v2171, 0.008332121
        %v2173 = vmul.f32 %v2170, %v2172
        %v2174 = vadd.f32 %v2173, -0.16666654
        %v2175 = vmul.f32 %v2170, %v2174
        %v2176 = vadd.f32 %v2175, 1.0
        %v2177 = vmul.f32 %v2176, %v2161
        %vm2178 = vweird.f32 %v316
        %v2179 = vadd.s32 %v2162, 3
        %v2180 = vand.u32 %v2179, 3
        %vm2181 = vcmp.lt.s32.totalorder %v2180, 2
        %vm2182 = vcmp.eq.s32.totalorder %v2180, 0
        %v2183 = vxor.u32 %v2177, 2147483648
        %v2184 = vsel %vm2182, %v2169, %v2183
        %vm2185 = vcmp.eq.s32.totalorder %v2180, 2
        %v2186 = vxor.u32 %v2169, 2147483648
        %v2187 = vsel %vm2185, %v2186, %v2177
        %v2188 = vsel %vm2181, %v2184, %v2187
        %v2189 = vsel %vm2178, nan, %v2188
        %v2190 = vand.u32 2147483647, %v319
        %vm2191 = vcmp.le.f32.partialorder %v2190, 0.7853982
        %vm2192 = vcmp.lt.s32.totalorder %v319, 0
        %v2193 = vand.u32 %v319, 2139095040
        %v2194 = vshrl.u32 %v2193, 23
        %v2195 = vsub.s32 %v2194, 127
        %v2196 = vand.u32 2147483647, %v319
        %v2197 = vand.u32 %v2196, 8388607
        %v2198 = vor.u32 %v2197, 8388608
        %v2199 = vsub.s32 0, %v2198
        %v2200 = vadd.s32 %v2195, 1
        %vm2201 = vcmp.gt.s32.totalorder %v2200, 0
        %v2202 = vsel %vm2201, %v2200, 0
        %v2203 = vshrl.u32 %v2202, 5
        %v2204 = vand.u32 %v2202, 31
        %v2205 = vsub.s32 32, %v2204
        %v2206 = vshrl.u32 683565275, %v2205
        %v2207 = vshll.u32 683565275, %v2204
        %v2208 = vshrl.u32 2475754826, %v2205
        %v2209 = vor.u32 %v2207, %v2208
        %v2210 = vshll.u32 2475754826, %v2204
        %v2211 = vshrl.u32 2131351028, %v2205
        %v2212 = vor.u32 %v2210, %v2211
        %v2213 = vshll.u32 2131351028, %v2204
        %v2214 = vshrl.u32 2102212464, %v2205
        %v2215 = vor.u32 %v2213, %v2214
        %v2216 = vshll.u32 2102212464, %v2204
        %v2217 = vshrl.u32 920167782, %v2205
        %v2218 = vor.u32 %v2216, %v2217
        %v2219 = vshll.u32 920167782, %v2204
        %v2220 = vshrl.u32 1326507024, %v2205
        %v2221 = vor.u32 %v2219, %v2220
        %vm2222 = vcmp.lt.s32.totalorder %v2203, 1
        %vm2223 = vcmp.lt.s32.totalorder %v2203, 2
        %vm2224 = vcmp.lt.s32.totalorder %v2203, 3
        %vm2225 = vcmp.lt.s32.totalorder %v2203, 4
        %v2226 = vsel %vm2222, %v2206, %v2209
        %v2227 = vsel %vm2225, %v2215, 2102212464
        %v2228 = vsel %vm2224, %v2212, %v2227
        %v2229 = vsel %vm2223, %v2226, %v2228
        %v2230 = vsel %vm2222, %v2209, %v2212
        %v2231 = vsel %vm2225, %v2218, 920167782
        %v2232 = vsel %vm2224, %v2215, %v2231
        %v2233 = vsel %vm2223, %v2230, %v2232
        %v2234 = vsel %vm2222, %v2212, %v2215
        %v2235 = vsel %vm2225, %v2221, 1326507024
        %v2236 = vsel %vm2224, %v2218, %v2235
        %v2237 = vsel %vm2223, %v2234, %v2236
        %v2238 = vshll.u32 %v2198, 8
        %v2239 = vand.u32 %v2238, 65535
        %v2240 = vshrl.u32 %v2238, 16
        %v2241 = vand.u32 %v2237, 65535
        %v2242 = vshrl.u32 %v2237, 16
        %v2243 = vmul.u32 %v2239, %v2241
        %v2244 = vmul.u32 %v2239, %v2242
        %v2245 = vmul.u32 %v2240, %v2241
        %v2246 = vmul.u32 %v2240, %v2242
        %v2247 = vshll.u32 %v2244, 16
        %v2248 = vshrl.u32 %v2244, 16
        %v2249 = vshll.u32 %v2245, 16
        %v2250 = vshrl.u32 %v2245, 16
        %vm2251 = vc.u32 %v2243, %v2247
        %v2252 = vsel %vm2251, 1, 0
        %v2253 = vadd.s32 %v2243, %v2247
        %v2254 = vadd.s32 %v2246, %v2252
        %vm2255 = vc.u32 %v2253, %v2249
        %v2256 = vsel %vm2255, 1, 0
        %v2257 = vadd.s32 %v2253, %v2249
        %v2258 = vadd.s32 %v2254, %v2256
        %v2259 = vadd.s32 %v2258, %v2248
        %v2260 = vadd.s32 %v2259, %v2250
        %v2261 = vand.u32 %v2238, 65535
        %v2262 = vshrl.u32 %v2238, 16
        %v2263 = vand.u32 %v2233, 65535
        %v2264 = vshrl.u32 %v2233, 16
        %v2265 = vmul.u32 %v2261, %v2263
        %v2266 = vmul.u32 %v2261, %v2264
        %v2267 = vmul.u32 %v2262, %v2263
        %v2268 = vmul.u32 %v2262, %v2264
        %v2269 = vshll.u32 %v2266, 16
        %v2270 = vshrl.u32 %v2266, 16
        %v2271 = vshll.u32 %v2267, 16
        %v2272 = vshrl.u32 %v2267, 16
        %vm2273 = vc.u32 %v2265, %v2269
        %v2274 = vsel %vm2273, 1, 0
        %v2275 = vadd.s32 %v2265, %v2269
        %v2276 = vadd.s32 %v2268, %v2274
        %vm2277 = vc.u32 %v2275, %v2271
        %v2278 = vsel %vm2277, 1, 0
        %v2279 = vadd.s32 %v2275, %v2271
        %v2280 = vadd.s32 %v2276, %v2278
        %v2281 = vadd.s32 %v2280, %v2270
        %v2282 = vadd.s32 %v2281, %v2272
        %v2283 = vmul.u32 %v2238, %v2229
        %v2284 = vadd.s32 %v2260, %v2279
        %vm2285 = vc.u32 %v2260, %v2279
        %v2286 = vadd.s32 %v2282, 1
        %v2287 = vsel %vm2285, %v2286, %v2282
        %v2288 = vadd.s32 %v2283, %v2287
        %v2289 = vadd.s32 %v2288, 536870912
        %v2290 = vshrl.u32 %v2289, 30
        %v2291 = vshll.u32 %v2290, 30
        %v2292 = vsub.s32 %v2288, %v2291
        %vm2293 = vcmp.lt.s32.totalorder %v2292, 0
        %v2294 = vsub.s32 0, %v2292
        %v2295 = vsel %vm2293, %v2294, %v2292
        %v2296 = vclz %v2295
        %v2297 = vsub.s32 %v2296, 2
        %vm2298 = vcmp.gt.s32.totalorder 0, %v2297
        %v2299 = vsel %vm2298, 0, %v2297
        %v2300 = vsub.s32 32, %v2299
        %v2301 = vshll.u32 %v2292, %v2299
        %v2302 = vshrl.u32 %v2284, %v2300
        %v2303 = vor.u32 %v2301, %v2302
        %v2304 = vsub.s32 4294967266, %v2299
        %v2305 = vadd.s32 %v2304, 127
        %v2306 = vshll.u32 %v2305, 23
        %v2307 = vor.u32 4788187, %v2306
        %v2308 = vand.u32 2147483647, %v2307
        %v2310 = vcvt.s32.f32 %v2303
        %v2311 = vmul.f32 %v2310, %v2308
        %v2312 = vxor.u32 %v2311, 2147483648
        %v2313 = vsel %vm2192, %v2312, %v2311
        %v2314 = vsub.s32 4, %v2290
        %v2315 = vsel %vm2192, %v2314, %v2290
        %v2316 = vsel %vm2191, %v319, %v2313
        %v2317 = vsel %vm2191, 0, %v2315
        %v2318 = vmul.f32 %v2316, %v2316
        %v2319 = vmul.f32 %v2318, -0.001358992
        %v2320 = vadd.f32 %v2319, 0.041655596
        %v2321 = vmul.f32 %v2318, %v2320
        %v2322 = vadd.f32 %v2321, -0.4999988
        %v2323 = vmul.f32 %v2318, %v2322
        %v2324 = vadd.f32 1.0, %v2323
        %v2325 = vmul.f32 %v2316, %v2316
        %v2326 = vmul.f32 %v2325, -0.00019511016
        %v2327 = vadd.f32 %v2326, 0.008332121
        %v2328 = vmul.f32 %v2325, %v2327
        %v2329 = vadd.f32 %v2328, -0.16666654
        %v2330 = vmul.f32 %v2325, %v2329
        %v2331 = vadd.f32 %v2330, 1.0
        %v2332 = vmul.f32 %v2331, %v2316
        %vm2333 = vweird.f32 %v319
        %v2334 = vadd.s32 %v2317, 3
        %v2335 = vand.u32 %v2334, 3
        %vm2336 = vcmp.lt.s32.totalorder %v2335, 2
        %vm2337 = vcmp.eq.s32.totalorder %v2335, 0
        %v2338 = vxor.u32 %v2332, 2147483648
        %v2339 = vsel %vm2337, %v2324, %v2338
        %vm2340 = vcmp.eq.s32.totalorder %v2335, 2
        %v2341 = vxor.u32 %v2324, 2147483648
        %v2342 = vsel %vm2340, %v2341, %v2332
        %v2343 = vsel %vm2336, %v2339, %v2342
        %v2344 = vsel %vm2333, nan, %v2343
        %v2345 = vand.u32 2147483647, %v322
        %vm2346 = vcmp.le.f32.partialorder %v2345, 0.7853982
        %vm2347 = vcmp.lt.s32.totalorder %v322, 0
        %v2348 = vand.u32 %v322, 2139095040
        %v2349 = vshrl.u32 %v2348, 23
        %v2350 = vsub.s32 %v2349, 127
        %v2351 = vand.u32 2147483647, %v322
        %v2352 = vand.u32 %v2351, 8388607
        %v2353 = vor.u32 %v2352, 8388608
        %v2354 = vsub.s32 0, %v2353
        %v2355 = vadd.s32 %v2350, 1
        %vm2356 = vcmp.gt.s32.totalorder %v2355, 0
        %v2357 = vsel %vm2356, %v2355, 0
        %v2358 = vshrl.u32 %v2357, 5
        %v2359 = vand.u32 %v2357, 31
        %v2360 = vsub.s32 32, %v2359
        %v2361 = vshrl.u32 683565275, %v2360
        %v2362 = vshll.u32 683565275, %v2359
        %v2363 = vshrl.u32 2475754826, %v2360
        %v2364 = vor.u32 %v2362, %v2363
        %v2365 = vshll.u32 2475754826, %v2359
        %v2366 = vshrl.u32 2131351028, %v2360
        %v2367 = vor.u32 %v2365, %v2366
        %v2368 = vshll.u32 2131351028, %v2359
        %v2369 = vshrl.u32 2102212464, %v2360
        %v2370 = vor.u32 %v2368, %v2369
        %v2371 = vshll.u32 2102212464, %v2359
        %v2372 = vshrl.u32 920167782, %v2360
        %v2373 = vor.u32 %v2371, %v2372
        %v2374 = vshll.u32 920167782, %v2359
        %v2375 = vshrl.u32 1326507024, %v2360
        %v2376 = vor.u32 %v2374, %v2375
        %vm2377 = vcmp.lt.s32.totalorder %v2358, 1
        %vm2378 = vcmp.lt.s32.totalorder %v2358, 2
        %vm2379 = vcmp.lt.s32.totalorder %v2358, 3
        %vm2380 = vcmp.lt.s32.totalorder %v2358, 4
        %v2381 = vsel %vm2377, %v2361, %v2364
        %v2382 = vsel %vm2380, %v2370, 2102212464
        %v2383 = vsel %vm2379, %v2367, %v2382
        %v2384 = vsel %vm2378, %v2381, %v2383
        %v2385 = vsel %vm2377, %v2364, %v2367
        %v2386 = vsel %vm2380, %v2373, 920167782
        %v2387 = vsel %vm2379, %v2370, %v2386
        %v2388 = vsel %vm2378, %v2385, %v2387
        %v2389 = vsel %vm2377, %v2367, %v2370
        %v2390 = vsel %vm2380, %v2376, 1326507024
        %v2391 = vsel %vm2379, %v2373, %v2390
        %v2392 = vsel %vm2378, %v2389, %v2391
        %v2393 = vshll.u32 %v2353, 8
        %v2394 = vand.u32 %v2393, 65535
        %v2395 = vshrl.u32 %v2393, 16
        %v2396 = vand.u32 %v2392, 65535
        %v2397 = vshrl.u32 %v2392, 16
        %v2398 = vmul.u32 %v2394, %v2396
        %v2399 = vmul.u32 %v2394, %v2397
        %v2400 = vmul.u32 %v2395, %v2396
        %v2401 = vmul.u32 %v2395, %v2397
        %v2402 = vshll.u32 %v2399, 16
        %v2403 = vshrl.u32 %v2399, 16
        %v2404 = vshll.u32 %v2400, 16
        %v2405 = vshrl.u32 %v2400, 16
        %vm2406 = vc.u32 %v2398, %v2402
        %v2407 = vsel %vm2406, 1, 0
        %v2408 = vadd.s32 %v2398, %v2402
        %v2409 = vadd.s32 %v2401, %v2407
        %vm2410 = vc.u32 %v2408, %v2404
        %v2411 = vsel %vm2410, 1, 0
        %v2412 = vadd.s32 %v2408, %v2404
        %v2413 = vadd.s32 %v2409, %v2411
        %v2414 = vadd.s32 %v2413, %v2403
        %v2415 = vadd.s32 %v2414, %v2405
        %v2416 = vand.u32 %v2393, 65535
        %v2417 = vshrl.u32 %v2393, 16
        %v2418 = vand.u32 %v2388, 65535
        %v2419 = vshrl.u32 %v2388, 16
        %v2420 = vmul.u32 %v2416, %v2418
        %v2421 = vmul.u32 %v2416, %v2419
        %v2422 = vmul.u32 %v2417, %v2418
        %v2423 = vmul.u32 %v2417, %v2419
        %v2424 = vshll.u32 %v2421, 16
        %v2425 = vshrl.u32 %v2421, 16
        %v2426 = vshll.u32 %v2422, 16
        %v2427 = vshrl.u32 %v2422, 16
        %vm2428 = vc.u32 %v2420, %v2424
        %v2429 = vsel %vm2428, 1, 0
        %v2430 = vadd.s32 %v2420, %v2424
        %v2431 = vadd.s32 %v2423, %v2429
        %vm2432 = vc.u32 %v2430, %v2426
        %v2433 = vsel %vm2432, 1, 0
        %v2434 = vadd.s32 %v2430, %v2426
        %v2435 = vadd.s32 %v2431, %v2433
        %v2436 = vadd.s32 %v2435, %v2425
        %v2437 = vadd.s32 %v2436, %v2427
        %v2438 = vmul.u32 %v2393, %v2384
        %v2439 = vadd.s32 %v2415, %v2434
        %vm2440 = vc.u32 %v2415, %v2434
        %v2441 = vadd.s32 %v2437, 1
        %v2442 = vsel %vm2440, %v2441, %v2437
        %v2443 = vadd.s32 %v2438, %v2442
        %v2444 = vadd.s32 %v2443, 536870912
        %v2445 = vshrl.u32 %v2444, 30
        %v2446 = vshll.u32 %v2445, 30
        %v2447 = vsub.s32 %v2443, %v2446
        %vm2448 = vcmp.lt.s32.totalorder %v2447, 0
        %v2449 = vsub.s32 0, %v2447
        %v2450 = vsel %vm2448, %v2449, %v2447
        %v2451 = vclz %v2450
        %v2452 = vsub.s32 %v2451, 2
        %vm2453 = vcmp.gt.s32.totalorder 0, %v2452
        %v2454 = vsel %vm2453, 0, %v2452
        %v2455 = vsub.s32 32, %v2454
        %v2456 = vshll.u32 %v2447, %v2454
        %v2457 = vshrl.u32 %v2439, %v2455
        %v2458 = vor.u32 %v2456, %v2457
        %v2459 = vsub.s32 4294967266, %v2454
        %v2460 = vadd.s32 %v2459, 127
        %v2461 = vshll.u32 %v2460, 23
        %v2462 = vor.u32 4788187, %v2461
        %v2463 = vand.u32 2147483647, %v2462
        %v2465 = vcvt.s32.f32 %v2458
        %v2466 = vmul.f32 %v2465, %v2463
        %v2467 = vxor.u32 %v2466, 2147483648
        %v2468 = vsel %vm2347, %v2467, %v2466
        %v2469 = vsub.s32 4, %v2445
        %v2470 = vsel %vm2347, %v2469, %v2445
        %v2471 = vsel %vm2346, %v322, %v2468
        %v2472 = vsel %vm2346, 0, %v2470
        %v2473 = vmul.f32 %v2471, %v2471
        %v2474 = vmul.f32 %v2473, -0.001358992
        %v2475 = vadd.f32 %v2474, 0.041655596
        %v2476 = vmul.f32 %v2473, %v2475
        %v2477 = vadd.f32 %v2476, -0.4999988
        %v2478 = vmul.f32 %v2473, %v2477
        %v2479 = vadd.f32 1.0, %v2478
        %v2480 = vmul.f32 %v2471, %v2471
        %v2481 = vmul.f32 %v2480, -0.00019511016
        %v2482 = vadd.f32 %v2481, 0.008332121
        %v2483 = vmul.f32 %v2480, %v2482
        %v2484 = vadd.f32 %v2483, -0.16666654
        %v2485 = vmul.f32 %v2480, %v2484
        %v2486 = vadd.f32 %v2485, 1.0
        %v2487 = vmul.f32 %v2486, %v2471
        %vm2488 = vweird.f32 %v322
        %v2489 = vadd.s32 %v2472, 3
        %v2490 = vand.u32 %v2489, 3
        %vm2491 = vcmp.lt.s32.totalorder %v2490, 2
        %vm2492 = vcmp.eq.s32.totalorder %v2490, 0
        %v2493 = vxor.u32 %v2487, 2147483648
        %v2494 = vsel %vm2492, %v2479, %v2493
        %vm2495 = vcmp.eq.s32.totalorder %v2490, 2
        %v2496 = vxor.u32 %v2479, 2147483648
        %v2497 = vsel %vm2495, %v2496, %v2487
        %v2498 = vsel %vm2491, %v2494, %v2497
        %v2499 = vsel %vm2488, nan, %v2498
        %v2500 = vand.u32 2147483647, %v325
        %vm2501 = vcmp.le.f32.partialorder %v2500, 0.7853982
        %vm2502 = vcmp.lt.s32.totalorder %v325, 0
        %v2503 = vand.u32 %v325, 2139095040
        %v2504 = vshrl.u32 %v2503, 23
        %v2505 = vsub.s32 %v2504, 127
        %v2506 = vand.u32 2147483647, %v325
        %v2507 = vand.u32 %v2506, 8388607
        %v2508 = vor.u32 %v2507, 8388608
        %v2509 = vsub.s32 0, %v2508
        %v2510 = vadd.s32 %v2505, 1
        %vm2511 = vcmp.gt.s32.totalorder %v2510, 0
        %v2512 = vsel %vm2511, %v2510, 0
        %v2513 = vshrl.u32 %v2512, 5
        %v2514 = vand.u32 %v2512, 31
        %v2515 = vsub.s32 32, %v2514
        %v2516 = vshrl.u32 683565275, %v2515
        %v2517 = vshll.u32 683565275, %v2514
        %v2518 = vshrl.u32 2475754826, %v2515
        %v2519 = vor.u32 %v2517, %v2518
        %v2520 = vshll.u32 2475754826, %v2514
        %v2521 = vshrl.u32 2131351028, %v2515
        %v2522 = vor.u32 %v2520, %v2521
        %v2523 = vshll.u32 2131351028, %v2514
        %v2524 = vshrl.u32 2102212464, %v2515
        %v2525 = vor.u32 %v2523, %v2524
        %v2526 = vshll.u32 2102212464, %v2514
        %v2527 = vshrl.u32 920167782, %v2515
        %v2528 = vor.u32 %v2526, %v2527
        %v2529 = vshll.u32 920167782, %v2514
        %v2530 = vshrl.u32 1326507024, %v2515
        %v2531 = vor.u32 %v2529, %v2530
        %vm2532 = vcmp.lt.s32.totalorder %v2513, 1
        %vm2533 = vcmp.lt.s32.totalorder %v2513, 2
        %vm2534 = vcmp.lt.s32.totalorder %v2513, 3
        %vm2535 = vcmp.lt.s32.totalorder %v2513, 4
        %v2536 = vsel %vm2532, %v2516, %v2519
        %v2537 = vsel %vm2535, %v2525, 2102212464
        %v2538 = vsel %vm2534, %v2522, %v2537
        %v2539 = vsel %vm2533, %v2536, %v2538
        %v2540 = vsel %vm2532, %v2519, %v2522
        %v2541 = vsel %vm2535, %v2528, 920167782
        %v2542 = vsel %vm2534, %v2525, %v2541
        %v2543 = vsel %vm2533, %v2540, %v2542
        %v2544 = vsel %vm2532, %v2522, %v2525
        %v2545 = vsel %vm2535, %v2531, 1326507024
        %v2546 = vsel %vm2534, %v2528, %v2545
        %v2547 = vsel %vm2533, %v2544, %v2546
        %v2548 = vshll.u32 %v2508, 8
        %v2549 = vand.u32 %v2548, 65535
        %v2550 = vshrl.u32 %v2548, 16
        %v2551 = vand.u32 %v2547, 65535
        %v2552 = vshrl.u32 %v2547, 16
        %v2553 = vmul.u32 %v2549, %v2551
        %v2554 = vmul.u32 %v2549, %v2552
        %v2555 = vmul.u32 %v2550, %v2551
        %v2556 = vmul.u32 %v2550, %v2552
        %v2557 = vshll.u32 %v2554, 16
        %v2558 = vshrl.u32 %v2554, 16
        %v2559 = vshll.u32 %v2555, 16
        %v2560 = vshrl.u32 %v2555, 16
        %vm2561 = vc.u32 %v2553, %v2557
        %v2562 = vsel %vm2561, 1, 0
        %v2563 = vadd.s32 %v2553, %v2557
        %v2564 = vadd.s32 %v2556, %v2562
        %vm2565 = vc.u32 %v2563, %v2559
        %v2566 = vsel %vm2565, 1, 0
        %v2567 = vadd.s32 %v2563, %v2559
        %v2568 = vadd.s32 %v2564, %v2566
        %v2569 = vadd.s32 %v2568, %v2558
        %v2570 = vadd.s32 %v2569, %v2560
        %v2571 = vand.u32 %v2548, 65535
        %v2572 = vshrl.u32 %v2548, 16
        %v2573 = vand.u32 %v2543, 65535
        %v2574 = vshrl.u32 %v2543, 16
        %v2575 = vmul.u32 %v2571, %v2573
        %v2576 = vmul.u32 %v2571, %v2574
        %v2577 = vmul.u32 %v2572, %v2573
        %v2578 = vmul.u32 %v2572, %v2574
        %v2579 = vshll.u32 %v2576, 16
        %v2580 = vshrl.u32 %v2576, 16
        %v2581 = vshll.u32 %v2577, 16
        %v2582 = vshrl.u32 %v2577, 16
        %vm2583 = vc.u32 %v2575, %v2579
        %v2584 = vsel %vm2583, 1, 0
        %v2585 = vadd.s32 %v2575, %v2579
        %v2586 = vadd.s32 %v2578, %v2584
        %vm2587 = vc.u32 %v2585, %v2581
        %v2588 = vsel %vm2587, 1, 0
        %v2589 = vadd.s32 %v2585, %v2581
        %v2590 = vadd.s32 %v2586, %v2588
        %v2591 = vadd.s32 %v2590, %v2580
        %v2592 = vadd.s32 %v2591, %v2582
        %v2593 = vmul.u32 %v2548, %v2539
        %v2594 = vadd.s32 %v2570, %v2589
        %vm2595 = vc.u32 %v2570, %v2589
        %v2596 = vadd.s32 %v2592, 1
        %v2597 = vsel %vm2595, %v2596, %v2592
        %v2598 = vadd.s32 %v2593, %v2597
        %v2599 = vadd.s32 %v2598, 536870912
        %v2600 = vshrl.u32 %v2599, 30
        %v2601 = vshll.u32 %v2600, 30
        %v2602 = vsub.s32 %v2598, %v2601
        %vm2603 = vcmp.lt.s32.totalorder %v2602, 0
        %v2604 = vsub.s32 0, %v2602
        %v2605 = vsel %vm2603, %v2604, %v2602
        %v2606 = vclz %v2605
        %v2607 = vsub.s32 %v2606, 2
        %vm2608 = vcmp.gt.s32.totalorder 0, %v2607
        %v2609 = vsel %vm2608, 0, %v2607
        %v2610 = vsub.s32 32, %v2609
        %v2611 = vshll.u32 %v2602, %v2609
        %v2612 = vshrl.u32 %v2594, %v2610
        %v2613 = vor.u32 %v2611, %v2612
        %v2614 = vsub.s32 4294967266, %v2609
        %v2615 = vadd.s32 %v2614, 127
        %v2616 = vshll.u32 %v2615, 23
        %v2617 = vor.u32 4788187, %v2616
        %v2618 = vand.u32 2147483647, %v2617
        %v2620 = vcvt.s32.f32 %v2613
        %v2621 = vmul.f32 %v2620, %v2618
        %v2622 = vxor.u32 %v2621, 2147483648
        %v2623 = vsel %vm2502, %v2622, %v2621
        %v2624 = vsub.s32 4, %v2600
        %v2625 = vsel %vm2502, %v2624, %v2600
        %v2626 = vsel %vm2501, %v325, %v2623
        %v2627 = vsel %vm2501, 0, %v2625
        %v2628 = vmul.f32 %v2626, %v2626
        %v2629 = vmul.f32 %v2628, -0.001358992
        %v2630 = vadd.f32 %v2629, 0.041655596
        %v2631 = vmul.f32 %v2628, %v2630
        %v2632 = vadd.f32 %v2631, -0.4999988
        %v2633 = vmul.f32 %v2628, %v2632
        %v2634 = vadd.f32 1.0, %v2633
        %v2635 = vmul.f32 %v2626, %v2626
        %v2636 = vmul.f32 %v2635, -0.00019511016
        %v2637 = vadd.f32 %v2636, 0.008332121
        %v2638 = vmul.f32 %v2635, %v2637
        %v2639 = vadd.f32 %v2638, -0.16666654
        %v2640 = vmul.f32 %v2635, %v2639
        %v2641 = vadd.f32 %v2640, 1.0
        %v2642 = vmul.f32 %v2641, %v2626
        %vm2643 = vweird.f32 %v325
        %v2644 = vadd.s32 %v2627, 3
        %v2645 = vand.u32 %v2644, 3
        %vm2646 = vcmp.lt.s32.totalorder %v2645, 2
        %vm2647 = vcmp.eq.s32.totalorder %v2645, 0
        %v2648 = vxor.u32 %v2642, 2147483648
        %v2649 = vsel %vm2647, %v2634, %v2648
        %vm2650 = vcmp.eq.s32.totalorder %v2645, 2
        %v2651 = vxor.u32 %v2634, 2147483648
        %v2652 = vsel %vm2650, %v2651, %v2642
        %v2653 = vsel %vm2646, %v2649, %v2652
        %v2654 = vsel %vm2643, nan, %v2653
        %v2655 = vand.u32 2147483647, %v328
        %vm2656 = vcmp.le.f32.partialorder %v2655, 0.7853982
        %vm2657 = vcmp.lt.s32.totalorder %v328, 0
        %v2658 = vand.u32 %v328, 2139095040
        %v2659 = vshrl.u32 %v2658, 23
        %v2660 = vsub.s32 %v2659, 127
        %v2661 = vand.u32 2147483647, %v328
        %v2662 = vand.u32 %v2661, 8388607
        %v2663 = vor.u32 %v2662, 8388608
        %v2664 = vsub.s32 0, %v2663
        %v2665 = vadd.s32 %v2660, 1
        %vm2666 = vcmp.gt.s32.totalorder %v2665, 0
        %v2667 = vsel %vm2666, %v2665, 0
        %v2668 = vshrl.u32 %v2667, 5
        %v2669 = vand.u32 %v2667, 31
        %v2670 = vsub.s32 32, %v2669
        %v2671 = vshrl.u32 683565275, %v2670
        %v2672 = vshll.u32 683565275, %v2669
        %v2673 = vshrl.u32 2475754826, %v2670
        %v2674 = vor.u32 %v2672, %v2673
        %v2675 = vshll.u32 2475754826, %v2669
        %v2676 = vshrl.u32 2131351028, %v2670
        %v2677 = vor.u32 %v2675, %v2676
        %v2678 = vshll.u32 2131351028, %v2669
        %v2679 = vshrl.u32 2102212464, %v2670
        %v2680 = vor.u32 %v2678, %v2679
        %v2681 = vshll.u32 2102212464, %v2669
        %v2682 = vshrl.u32 920167782, %v2670
        %v2683 = vor.u32 %v2681, %v2682
        %v2684 = vshll.u32 920167782, %v2669
        %v2685 = vshrl.u32 1326507024, %v2670
        %v2686 = vor.u32 %v2684, %v2685
        %vm2687 = vcmp.lt.s32.totalorder %v2668, 1
        %vm2688 = vcmp.lt.s32.totalorder %v2668, 2
        %vm2689 = vcmp.lt.s32.totalorder %v2668, 3
        %vm2690 = vcmp.lt.s32.totalorder %v2668, 4
        %v2691 = vsel %vm2687, %v2671, %v2674
        %v2692 = vsel %vm2690, %v2680, 2102212464
        %v2693 = vsel %vm2689, %v2677, %v2692
        %v2694 = vsel %vm2688, %v2691, %v2693
        %v2695 = vsel %vm2687, %v2674, %v2677
        %v2696 = vsel %vm2690, %v2683, 920167782
        %v2697 = vsel %vm2689, %v2680, %v2696
        %v2698 = vsel %vm2688, %v2695, %v2697
        %v2699 = vsel %vm2687, %v2677, %v2680
        %v2700 = vsel %vm2690, %v2686, 1326507024
        %v2701 = vsel %vm2689, %v2683, %v2700
        %v2702 = vsel %vm2688, %v2699, %v2701
        %v2703 = vshll.u32 %v2663, 8
        %v2704 = vand.u32 %v2703, 65535
        %v2705 = vshrl.u32 %v2703, 16
        %v2706 = vand.u32 %v2702, 65535
        %v2707 = vshrl.u32 %v2702, 16
        %v2708 = vmul.u32 %v2704, %v2706
        %v2709 = vmul.u32 %v2704, %v2707
        %v2710 = vmul.u32 %v2705, %v2706
        %v2711 = vmul.u32 %v2705, %v2707
        %v2712 = vshll.u32 %v2709, 16
        %v2713 = vshrl.u32 %v2709, 16
        %v2714 = vshll.u32 %v2710, 16
        %v2715 = vshrl.u32 %v2710, 16
        %vm2716 = vc.u32 %v2708, %v2712
        %v2717 = vsel %vm2716, 1, 0
        %v2718 = vadd.s32 %v2708, %v2712
        %v2719 = vadd.s32 %v2711, %v2717
        %vm2720 = vc.u32 %v2718, %v2714
        %v2721 = vsel %vm2720, 1, 0
        %v2722 = vadd.s32 %v2718, %v2714
        %v2723 = vadd.s32 %v2719, %v2721
        %v2724 = vadd.s32 %v2723, %v2713
        %v2725 = vadd.s32 %v2724, %v2715
        %v2726 = vand.u32 %v2703, 65535
        %v2727 = vshrl.u32 %v2703, 16
        %v2728 = vand.u32 %v2698, 65535
        %v2729 = vshrl.u32 %v2698, 16
        %v2730 = vmul.u32 %v2726, %v2728
        %v2731 = vmul.u32 %v2726, %v2729
        %v2732 = vmul.u32 %v2727, %v2728
        %v2733 = vmul.u32 %v2727, %v2729
        %v2734 = vshll.u32 %v2731, 16
        %v2735 = vshrl.u32 %v2731, 16
        %v2736 = vshll.u32 %v2732, 16
        %v2737 = vshrl.u32 %v2732, 16
        %vm2738 = vc.u32 %v2730, %v2734
        %v2739 = vsel %vm2738, 1, 0
        %v2740 = vadd.s32 %v2730, %v2734
        %v2741 = vadd.s32 %v2733, %v2739
        %vm2742 = vc.u32 %v2740, %v2736
        %v2743 = vsel %vm2742, 1, 0
        %v2744 = vadd.s32 %v2740, %v2736
        %v2745 = vadd.s32 %v2741, %v2743
        %v2746 = vadd.s32 %v2745, %v2735
        %v2747 = vadd.s32 %v2746, %v2737
        %v2748 = vmul.u32 %v2703, %v2694
        %v2749 = vadd.s32 %v2725, %v2744
        %vm2750 = vc.u32 %v2725, %v2744
        %v2751 = vadd.s32 %v2747, 1
        %v2752 = vsel %vm2750, %v2751, %v2747
        %v2753 = vadd.s32 %v2748, %v2752
        %v2754 = vadd.s32 %v2753, 536870912
        %v2755 = vshrl.u32 %v2754, 30
        %v2756 = vshll.u32 %v2755, 30
        %v2757 = vsub.s32 %v2753, %v2756
        %vm2758 = vcmp.lt.s32.totalorder %v2757, 0
        %v2759 = vsub.s32 0, %v2757
        %v2760 = vsel %vm2758, %v2759, %v2757
        %v2761 = vclz %v2760
        %v2762 = vsub.s32 %v2761, 2
        %vm2763 = vcmp.gt.s32.totalorder 0, %v2762
        %v2764 = vsel %vm2763, 0, %v2762
        %v2765 = vsub.s32 32, %v2764
        %v2766 = vshll.u32 %v2757, %v2764
        %v2767 = vshrl.u32 %v2749, %v2765
        %v2768 = vor.u32 %v2766, %v2767
        %v2769 = vsub.s32 4294967266, %v2764
        %v2770 = vadd.s32 %v2769, 127
        %v2771 = vshll.u32 %v2770, 23
        %v2772 = vor.u32 4788187, %v2771
        %v2773 = vand.u32 2147483647, %v2772
        %v2775 = vcvt.s32.f32 %v2768
        %v2776 = vmul.f32 %v2775, %v2773
        %v2777 = vxor.u32 %v2776, 2147483648
        %v2778 = vsel %vm2657, %v2777, %v2776
        %v2779 = vsub.s32 4, %v2755
        %v2780 = vsel %vm2657, %v2779, %v2755
        %v2781 = vsel %vm2656, %v328, %v2778
        %v2782 = vsel %vm2656, 0, %v2780
        %v2783 = vmul.f32 %v2781, %v2781
        %v2784 = vmul.f32 %v2783, -0.001358992
        %v2785 = vadd.f32 %v2784, 0.041655596
        %v2786 = vmul.f32 %v2783, %v2785
        %v2787 = vadd.f32 %v2786, -0.4999988
        %v2788 = vmul.f32 %v2783, %v2787
        %v2789 = vadd.f32 1.0, %v2788
        %v2790 = vmul.f32 %v2781, %v2781
        %v2791 = vmul.f32 %v2790, -0.00019511016
        %v2792 = vadd.f32 %v2791, 0.008332121
        %v2793 = vmul.f32 %v2790, %v2792
        %v2794 = vadd.f32 %v2793, -0.16666654
        %v2795 = vmul.f32 %v2790, %v2794
        %v2796 = vadd.f32 %v2795, 1.0
        %v2797 = vmul.f32 %v2796, %v2781
        %vm2798 = vweird.f32 %v328
        %v2799 = vadd.s32 %v2782, 3
        %v2800 = vand.u32 %v2799, 3
        %vm2801 = vcmp.lt.s32.totalorder %v2800, 2
        %vm2802 = vcmp.eq.s32.totalorder %v2800, 0
        %v2803 = vxor.u32 %v2797, 2147483648
        %v2804 = vsel %vm2802, %v2789, %v2803
        %vm2805 = vcmp.eq.s32.totalorder %v2800, 2
        %v2806 = vxor.u32 %v2789, 2147483648
        %v2807 = vsel %vm2805, %v2806, %v2797
        %v2808 = vsel %vm2801, %v2804, %v2807
        %v2809 = vsel %vm2798, nan, %v2808
        %vm2810 = vcmask 523264
        %2811 = vst.msk [vmem:[%s172] sm:$0xff] %vm2810, %v484
        %2812 = vst.msk [vmem:[%s172 + $0x8] sm:$0xff] %vm2810, %v639
        %2813 = vst.msk [vmem:[%s172 + $0x10] sm:$0xff] %vm2810, %v794
        %2814 = vst.msk [vmem:[%s172 + $0x18] sm:$0xff] %vm2810, %v949
        %2815 = vst.msk [vmem:[%s172 + $0x20] sm:$0xff] %vm2810, %v1104
        %2816 = vst.msk [vmem:[%s172 + $0x28] sm:$0xff] %vm2810, %v1259
        %2817 = vst.msk [vmem:[%s172 + $0x30] sm:$0xff] %vm2810, %v1414
        %2818 = vst.msk [vmem:[%s172 + $0x38] sm:$0xff] %vm2810, %v1569
        %2819 = vst.msk [vmem:[%s172 + $0x40] sm:$0xff] %vm2810, %v1724
        %2820 = vst.msk [vmem:[%s172 + $0x48] sm:$0xff] %vm2810, %v1879
        %2821 = vst.msk [vmem:[%s172 + $0x50] sm:$0xff] %vm2810, %v2034
        %2822 = vst.msk [vmem:[%s172 + $0x58] sm:$0xff] %vm2810, %v2189
        %2823 = vst.msk [vmem:[%s172 + $0x60] sm:$0xff] %vm2810, %v2344
        %2824 = vst.msk [vmem:[%s172 + $0x68] sm:$0xff] %vm2810, %v2499
        %2825 = vst.msk [vmem:[%s172 + $0x70] sm:$0xff] %vm2810, %v2654
        %2826 = vst.msk [vmem:[%s172 + $0x78] sm:$0xff] %vm2810, %v2809
        %s2827 = sand.u32 %s90, 1
        %s2828 = sand.u32 %s90, 1
        %s2829 = smul.addr %s2828, 128
        %s2830 = scalar_lea.vmem [#allocation2], %s2829
        // Predicated region
        $region33: #{tpu_custom_call.1} parent=31 // pred_check
          %p2831 = pneg %p100
        $region34: #{tpu_custom_call.1} parent=31 // pred_check_branch
          %2833 = sbr.rel (%p2831) target = $region36
        $region35: #{tpu_custom_call.1} parent=31 // pred_region
          %s2834 = smul.u32 16, %s14
          %s2835 = ssub.s32 25, %s2834
          %p2836 = scmp.lt.s32.totalorder %s2835, 16
          %s2837 = scalar_select %p2836, %s2835, 16
          %s2838 = smul.u32 8, %s2837
          %p2839 = scmp.ne.s32.totalorder 0, %s2838
          %s2840 = smul.addr %s2834, 8
          %s2841 = scalar_lea.vmem %s3, %s2840
          // Predicated region
          $region37: #{tpu_custom_call.1} parent=35 // pred_check
            %p2842 = pneg %p2839
          $region38: #{tpu_custom_call.1} parent=35 // pred_check_branch
            %2844 = sbr.rel (%p2842) target = $region40
          $region39: #{tpu_custom_call.1} parent=35 // pred_region
            // Predicated region
            $region41: #{tpu_custom_call.1} parent=39 // pred_check
              _
            $region42: #{tpu_custom_call.1} parent=39 // pred_check_branch
              %2846 = sbr.rel (0) target = $region44
            $region43: #{tpu_custom_call.1} parent=39 // pred_region
              // Predicated region
              $region63: #{tpu_custom_call.1} parent=43 // pred_check
                _
              $region64: #{tpu_custom_call.1} parent=43 // pred_check_branch
                %2926 = sbr.rel (0) target = $region66
              $region65: #{tpu_custom_call.1} parent=43 // pred_region
                %s2927 = sshrl.u32 %s2837, 4
                // While loop
                $region67: #{tpu_custom_call.1} parent=65 // loop_pre_header
                  _
                $region68: #{tpu_custom_call.1} parent=65 // loop_header
                  %s2929 = sphi 0, %s2931
                  %p2930 = scmp.ge.s32.totalorder %s2929, %s2927
                  %s2934 = sphi 0, %s2971
                  %s2935 = sphi %s2830, %s2974
                  %s2936 = sphi %s2841, %s2975
                $region69: #{tpu_custom_call.1} parent=65 // loop_header_branch
                  %2933 = sbr.rel (%p2930) target = $region73
                $region70: #{tpu_custom_call.1} parent=65 // loop_body
                  %v2937 = vld [vmem:[%s2935] sm:$0xff]
                  %2938 = vst [vmem:[%s2936] sm:$0xff] %v2937
                  %v2939 = vld [vmem:[%s2935 + $0x8] sm:$0xff]
                  %2940 = vst [vmem:[%s2936 + $0x8] sm:$0xff] %v2939
                  %v2941 = vld [vmem:[%s2935 + $0x10] sm:$0xff]
                  %2942 = vst [vmem:[%s2936 + $0x10] sm:$0xff] %v2941
                  %v2943 = vld [vmem:[%s2935 + $0x18] sm:$0xff]
                  %2944 = vst [vmem:[%s2936 + $0x18] sm:$0xff] %v2943
                  %v2945 = vld [vmem:[%s2935 + $0x20] sm:$0xff]
                  %2946 = vst [vmem:[%s2936 + $0x20] sm:$0xff] %v2945
                  %v2947 = vld [vmem:[%s2935 + $0x28] sm:$0xff]
                  %2948 = vst [vmem:[%s2936 + $0x28] sm:$0xff] %v2947
                  %v2949 = vld [vmem:[%s2935 + $0x30] sm:$0xff]
                  %2950 = vst [vmem:[%s2936 + $0x30] sm:$0xff] %v2949
                  %v2951 = vld [vmem:[%s2935 + $0x38] sm:$0xff]
                  %2952 = vst [vmem:[%s2936 + $0x38] sm:$0xff] %v2951
                  %v2953 = vld [vmem:[%s2935 + $0x40] sm:$0xff]
                  %2954 = vst [vmem:[%s2936 + $0x40] sm:$0xff] %v2953
                  %v2955 = vld [vmem:[%s2935 + $0x48] sm:$0xff]
                  %2956 = vst [vmem:[%s2936 + $0x48] sm:$0xff] %v2955
                  %v2957 = vld [vmem:[%s2935 + $0x50] sm:$0xff]
                  %2958 = vst [vmem:[%s2936 + $0x50] sm:$0xff] %v2957
                  %v2959 = vld [vmem:[%s2935 + $0x58] sm:$0xff]
                  %2960 = vst [vmem:[%s2936 + $0x58] sm:$0xff] %v2959
                  %v2961 = vld [vmem:[%s2935 + $0x60] sm:$0xff]
                  %2962 = vst [vmem:[%s2936 + $0x60] sm:$0xff] %v2961
                  %v2963 = vld [vmem:[%s2935 + $0x68] sm:$0xff]
                  %2964 = vst [vmem:[%s2936 + $0x68] sm:$0xff] %v2963
                  %v2965 = vld [vmem:[%s2935 + $0x70] sm:$0xff]
                  %2966 = vst [vmem:[%s2936 + $0x70] sm:$0xff] %v2965
                  %v2967 = vld [vmem:[%s2935 + $0x78] sm:$0xff]
                  %2968 = vst [vmem:[%s2936 + $0x78] sm:$0xff] %v2967
                  %s2969 = sadd.s32 1, %s2934
                  %p2970 = scmp.ge.s32.totalorder %s2969, %s2927
                  %s2971 = scalar_select %p2970, 0, %s2969
                  %s2972 = smul.u32 %s2971, 128
                  %s2973 = smul.u32 %s2971, 128
                  %s2974 = scalar_lea.vmem %s2830, %s2972 [#allocation2]
                  %s2975 = scalar_lea.vmem %s2841, %s2973
                $region71: #{tpu_custom_call.1} parent=65 // loop_footer
                  %s2931 = sadd.s32 %s2929, 1
                $region72: #{tpu_custom_call.1} parent=65 // loop_footer_branch
                  %2928 = sbr.rel target = $region68
                $region73: #{tpu_custom_call.1} parent=65 // loop_exit
                  _
                %s2976 = sshrl.u32 %s2837, 4
                %s2977 = sand.u32 %s2837, 15
                %s2978 = smul.u32 %s2976, 16
                %s2979 = smul.u32 8, %s2978
                %s2980 = scalar_lea.vmem %s2830, %s2979 [#allocation2]
                %s2981 = smul.u32 8, %s2978
                %s2982 = scalar_lea.vmem %s2841, %s2981
                // While loop
                $region74: #{tpu_custom_call.1} parent=65 // loop_pre_header
                  _
                $region75: #{tpu_custom_call.1} parent=65 // loop_header
                  %s2984 = sphi 0, %s2986
                  %p2985 = scmp.ge.s32.totalorder %s2984, %s2977
                  %s2989 = sphi 0, %s2996
                  %s2990 = sphi %s2980, %s2999
                  %s2991 = sphi %s2982, %s3000
                $region76: #{tpu_custom_call.1} parent=65 // loop_header_branch
                  %2988 = sbr.rel (%p2985) target = $region80
                $region77: #{tpu_custom_call.1} parent=65 // loop_body
                  %v2992 = vld [vmem:[%s2990] sm:$0xff]
                  %2993 = vst [vmem:[%s2991] sm:$0xff] %v2992
                  %s2994 = sadd.s32 1, %s2989
                  %p2995 = scmp.ge.s32.totalorder %s2994, %s2977
                  %s2996 = scalar_select %p2995, 0, %s2994
                  %s2997 = smul.u32 %s2996, 8
                  %s2998 = smul.u32 %s2996, 8
                  %s2999 = scalar_lea.vmem %s2980, %s2997 [#allocation2]
                  %s3000 = scalar_lea.vmem %s2982, %s2998
                $region78: #{tpu_custom_call.1} parent=65 // loop_footer
                  %s2986 = sadd.s32 %s2984, 1
                $region79: #{tpu_custom_call.1} parent=65 // loop_footer_branch
                  %2983 = sbr.rel target = $region75
                $region80: #{tpu_custom_call.1} parent=65 // loop_exit
                  _
              $region66: #{tpu_custom_call.1} parent=43 // pred_fallthru
                _
              // Predicated region
              $region81: #{tpu_custom_call.1} parent=43 // pred_check
                _
              $region82: #{tpu_custom_call.1} parent=43 // pred_check_branch
                %3002 = sbr.rel target = $region84
              $region83: #{tpu_custom_call.1} parent=43 // pred_region
                _
              $region84: #{tpu_custom_call.1} parent=43 // pred_fallthru
                _
            $region44: #{tpu_custom_call.1} parent=39 // pred_fallthru
              _
            // Predicated region
            $region45: #{tpu_custom_call.1} parent=39 // pred_check
              _
            $region46: #{tpu_custom_call.1} parent=39 // pred_check_branch
              %2848 = sbr.rel target = $region48
            $region47: #{tpu_custom_call.1} parent=39 // pred_region
              %s2850 = ssub.s32 256, 1
              %s2851 = sshrl.u32 %s2837, 4
              // While loop
              $region49: #{tpu_custom_call.1} parent=47 // loop_pre_header
                _
              $region50: #{tpu_custom_call.1} parent=47 // loop_header
                %s2853 = sphi 0, %s2855
                %p2854 = scmp.ge.s32.totalorder %s2853, %s2851
                %s2858 = sphi 0, %s2895
                %s2859 = sphi %s2830, %s2898
                %s2860 = sphi %s2841, %s2899
              $region51: #{tpu_custom_call.1} parent=47 // loop_header_branch
                %2857 = sbr.rel (%p2854) target = $region55
              $region52: #{tpu_custom_call.1} parent=47 // loop_body
                %v2861 = vld [vmem:[%s2859] sm:%s2850]
                %2862 = vst [vmem:[%s2860] sm:%s2850] %v2861
                %v2863 = vld [vmem:[%s2859 + $0x8] sm:%s2850]
                %2864 = vst [vmem:[%s2860 + $0x8] sm:%s2850] %v2863
                %v2865 = vld [vmem:[%s2859 + $0x10] sm:%s2850]
                %2866 = vst [vmem:[%s2860 + $0x10] sm:%s2850] %v2865
                %v2867 = vld [vmem:[%s2859 + $0x18] sm:%s2850]
                %2868 = vst [vmem:[%s2860 + $0x18] sm:%s2850] %v2867
                %v2869 = vld [vmem:[%s2859 + $0x20] sm:%s2850]
                %2870 = vst [vmem:[%s2860 + $0x20] sm:%s2850] %v2869
                %v2871 = vld [vmem:[%s2859 + $0x28] sm:%s2850]
                %2872 = vst [vmem:[%s2860 + $0x28] sm:%s2850] %v2871
                %v2873 = vld [vmem:[%s2859 + $0x30] sm:%s2850]
                %2874 = vst [vmem:[%s2860 + $0x30] sm:%s2850] %v2873
                %v2875 = vld [vmem:[%s2859 + $0x38] sm:%s2850]
                %2876 = vst [vmem:[%s2860 + $0x38] sm:%s2850] %v2875
                %v2877 = vld [vmem:[%s2859 + $0x40] sm:%s2850]
                %2878 = vst [vmem:[%s2860 + $0x40] sm:%s2850] %v2877
                %v2879 = vld [vmem:[%s2859 + $0x48] sm:%s2850]
                %2880 = vst [vmem:[%s2860 + $0x48] sm:%s2850] %v2879
                %v2881 = vld [vmem:[%s2859 + $0x50] sm:%s2850]
                %2882 = vst [vmem:[%s2860 + $0x50] sm:%s2850] %v2881
                %v2883 = vld [vmem:[%s2859 + $0x58] sm:%s2850]
                %2884 = vst [vmem:[%s2860 + $0x58] sm:%s2850] %v2883
                %v2885 = vld [vmem:[%s2859 + $0x60] sm:%s2850]
                %2886 = vst [vmem:[%s2860 + $0x60] sm:%s2850] %v2885
                %v2887 = vld [vmem:[%s2859 + $0x68] sm:%s2850]
                %2888 = vst [vmem:[%s2860 + $0x68] sm:%s2850] %v2887
                %v2889 = vld [vmem:[%s2859 + $0x70] sm:%s2850]
                %2890 = vst [vmem:[%s2860 + $0x70] sm:%s2850] %v2889
                %v2891 = vld [vmem:[%s2859 + $0x78] sm:%s2850]
                %2892 = vst [vmem:[%s2860 + $0x78] sm:%s2850] %v2891
                %s2893 = sadd.s32 1, %s2858
                %p2894 = scmp.ge.s32.totalorder %s2893, %s2851
                %s2895 = scalar_select %p2894, 0, %s2893
                %s2896 = smul.u32 %s2895, 128
                %s2897 = smul.u32 %s2895, 128
                %s2898 = scalar_lea.vmem %s2830, %s2896 [#allocation2]
                %s2899 = scalar_lea.vmem %s2841, %s2897
              $region53: #{tpu_custom_call.1} parent=47 // loop_footer
                %s2855 = sadd.s32 %s2853, 1
              $region54: #{tpu_custom_call.1} parent=47 // loop_footer_branch
                %2852 = sbr.rel target = $region50
              $region55: #{tpu_custom_call.1} parent=47 // loop_exit
                _
              %s2900 = sshrl.u32 %s2837, 4
              %s2901 = sand.u32 %s2837, 15
              %s2902 = smul.u32 %s2900, 16
              %s2903 = smul.u32 8, %s2902
              %s2904 = scalar_lea.vmem %s2830, %s2903 [#allocation2]
              %s2905 = smul.u32 8, %s2902
              %s2906 = scalar_lea.vmem %s2841, %s2905
              // While loop
              $region56: #{tpu_custom_call.1} parent=47 // loop_pre_header
                _
              $region57: #{tpu_custom_call.1} parent=47 // loop_header
                %s2908 = sphi 0, %s2910
                %p2909 = scmp.ge.s32.totalorder %s2908, %s2901
                %s2913 = sphi 0, %s2920
                %s2914 = sphi %s2904, %s2923
                %s2915 = sphi %s2906, %s2924
              $region58: #{tpu_custom_call.1} parent=47 // loop_header_branch
                %2912 = sbr.rel (%p2909) target = $region62
              $region59: #{tpu_custom_call.1} parent=47 // loop_body
                %v2916 = vld [vmem:[%s2914] sm:%s2850]
                %2917 = vst [vmem:[%s2915] sm:%s2850] %v2916
                %s2918 = sadd.s32 1, %s2913
                %p2919 = scmp.ge.s32.totalorder %s2918, %s2901
                %s2920 = scalar_select %p2919, 0, %s2918
                %s2921 = smul.u32 %s2920, 8
                %s2922 = smul.u32 %s2920, 8
                %s2923 = scalar_lea.vmem %s2904, %s2921 [#allocation2]
                %s2924 = scalar_lea.vmem %s2906, %s2922
              $region60: #{tpu_custom_call.1} parent=47 // loop_footer
                %s2910 = sadd.s32 %s2908, 1
              $region61: #{tpu_custom_call.1} parent=47 // loop_footer_branch
                %2907 = sbr.rel target = $region57
              $region62: #{tpu_custom_call.1} parent=47 // loop_exit
                _
            $region48: #{tpu_custom_call.1} parent=39 // pred_fallthru
              _
          $region40: #{tpu_custom_call.1} parent=35 // pred_fallthru
            _
          %3003 = vnop
        $region36: #{tpu_custom_call.1} parent=31 // pred_fallthru
          _
      $region32: #{tpu_custom_call.1} parent=5 // pred_fallthru
        _
      %p3004 = scmp.le.s32.totalorder 2, %s9
      // Predicated region
      $region85: #{tpu_custom_call.1} parent=5 // pred_check
        %p3005 = pneg %p3004
      $region86: #{tpu_custom_call.1} parent=5 // pred_check_branch
        %3007 = sbr.rel (%p3005) target = $region88
      $region87: #{tpu_custom_call.1} parent=5 // pred_region
        %s3008 = ssub.s32 %s9, 2
        // Predicated region
        $region89: #{tpu_custom_call.1} parent=87 // pred_check
          %p3009 = pneg %p106
        $region90: #{tpu_custom_call.1} parent=87 // pred_check_branch
          %3011 = sbr.rel (%p3009) target = $region92
        $region91: #{tpu_custom_call.1} parent=87 // pred_region
          %s3012 = sand.u32 %s91, 1
          %s3013 = sand.u32 %s91, 1
          %s3014 = smul.addr %s3013, 128
          %s3015 = scalar_lea.vmem [#allocation2], %s3014
        $region92: #{tpu_custom_call.1} parent=87 // pred_fallthru
          _
      $region88: #{tpu_custom_call.1} parent=5 // pred_fallthru
        _
    $region6: #{tpu_custom_call.1} parent=1 // loop_footer
      %s13 = sadd.s32 1, %s9
    $region7: #{tpu_custom_call.1} parent=1 // loop_footer_branch
      %8 = sbr.rel target = $region3
    $region8: #{tpu_custom_call.1} parent=1 // loop_exit
      _

</llo_original>
